<compile_context>
chip_gen: v6e
topology: v6e:2x2x1
jax: 0.10.0
libtpu: 0.0.40
codegen_flags: <defaults>
</compile_context>

<pallas_src>
import jax
import jax.numpy as jnp
from jax import lax
from jax.experimental import pallas as pl
from jax.experimental.pallas import tpu as pltpu

EPS = 1e-5  # nn.InstanceNorm2d default eps (affine=False, no running stats)


def _round_up(x, m):
    return (x + m - 1) // m * m


def _make_resblock_kernel(H, W, Cp, HWo, FX, FY, LY):
    """Fused per-batch-element Resblock kernel.

    H, W : original spatial size
    Cp   : channel count padded to a multiple of 8 (f32 sublane tile)
    HWo  : (H+2)*(W+2) rounded up to a multiple of 128 (lane-dense window)
    FX   : lane offset of the real data inside the extended input row (>= W+3)
    FY   : lane offset of the stage-1 activation window inside the stash scratch (128-aligned)
    LY   : length of the stash scratch row
    """
    Wp = W + 2
    inv_cnt = 1.0 / float(H * W)
    # tap t = kh*3 + kw  ->  lane offset d = (kh-1)*Wp + (kw-1); matches prep_w() weight layout.
    taps = [(kh - 1) * Wp + (kw - 1) for kh in range(3) for kw in range(3)]

    def inorm(y, validf):
        # Single-pass per-channel stats over the H*W valid pixels only (f32).
        ym = y * validf                       # mask once; mask is 0/1 so ym*ym is also masked
        s1 = jnp.sum(ym, axis=-1, keepdims=True)
        s2 = jnp.sum(ym * ym, axis=-1, keepdims=True)
        mean = s1 * inv_cnt
        var = jnp.maximum(s2 * inv_cnt - mean * mean, 0.0)
        # Values at masked lanes are garbage here; they are re-masked (stage 1) or stripped
        # host-side (stage 2), and never reach the statistics.
        return (ym - mean) * lax.rsqrt(var + EPS)

    def kernel(x_ref, m_ref, w1_ref, w2_ref, o_ref, ybuf_ref, tap_ref):
        # x_ref  : (Cp, LX)     extended flattened zero-padded input row
        # m_ref  : (1, HWo)     1.0 at real output pixels, 0.0 at padding ring / lane tail
        # w1_ref : (Cp, 9*Cp)   tap-fused conv1 weights [co, t*Cp + ci]
        # w2_ref : (Cp, 9*Cp)   tap-fused conv2 weights
        # o_ref  : (Cp, HWo)    output in the padded flattened layout
        # ybuf_ref : (Cp, LY)   stage-1 activation stash with zero margins
        # tap_ref  : (9*Cp, HWo) tap-stacked matmul operand (fully overwritten before each use)
        validf = m_ref[...]

        # Zero only the margin strips (both 128-lane aligned); window is overwritten below.
        ybuf_ref[:, :FY] = jnp.zeros((Cp, FY), jnp.float32)
        ybuf_ref[:, FY + HWo:LY] = jnp.zeros((Cp, LY - FY - HWo), jnp.float32)

        # ---- stage 1: conv1 as one fused matmul + InstanceNorm + ReLU ----
        for t, d in enumerate(taps):
            tap_ref[t * Cp:(t + 1) * Cp, :] = x_ref[:, pl.ds(FX + d, HWo)]
        y1 = jnp.dot(w1_ref[...], tap_ref[...], preferred_element_type=jnp.float32)
        y1m = jnp.maximum(inorm(y1, validf), 0.0) * validf   # zero ring/tail -> conv2 zero pad

        # Stash stage-1 activation (lane-aligned store, FY % 128 == 0) so the stage-2 shifted
        # reads see correct zero borders.
        ybuf_ref[:, pl.ds(FY, HWo)] = y1m

        # ---- stage 2: conv2 as one fused matmul + InstanceNorm + residual + ReLU ----
        for t, d in enumerate(taps):
            if d == 0:
                tap_ref[t * Cp:(t + 1) * Cp, :] = y1m        # reuse in-register activation
            else:
                tap_ref[t * Cp:(t + 1) * Cp, :] = ybuf_ref[:, pl.ds(FY + d, HWo)]
        y2 = jnp.dot(w2_ref[...], tap_ref[...], preferred_element_type=jnp.float32)
        y2n = inorm(y2, validf)

        res = x_ref[:, pl.ds(FX, HWo)]        # residual == x at valid pixels (0 on ring/tail)
        # No final mask multiply: the padding ring / lane tail are stripped host-side.
        o_ref[...] = jnp.maximum(y2n + res, 0.0)

    return kernel


def resblock_forward(x, w1, b1, w2, b2):
    # b1/b2 accepted for parity with nn.Conv2d; a bias followed by affine=False InstanceNorm
    # is exactly cancelled by the mean subtraction -> not sent to the kernel.
    del b1, b2
    N, C, H, W = x.shape
    Hp, Wp = H + 2, W + 2
    HWp = Hp * Wp
    HWo = _round_up(HWp, 128)                      # lane-dense output window
    FX = _round_up(W + 3, 8)                       # input front margin (>= max |tap shift|)
    LX = _round_up(FX + HWo + (W + 3), 128)        # extended input row length
    FY = _round_up(W + 3, 128)                     # stash front margin (lane-aligned store)
    LY = _round_up(FY + HWo + (W + 3), 128)        # stash row length
    Cp = max(8, _round_up(C, 8))                   # sublane-aligned channel count (f32)

    # Host-side layout glue only (no im2col / 9x patch inflation): spatial zero-pad ring,
    # flatten, channel-pad, embed at lane offset FX of the extended row.
    xpad = jnp.pad(x.astype(jnp.float32), ((0, 0), (0, 0), (1, 1), (1, 1)))
    xflat = xpad.reshape(N, C, HWp)
    xext = jnp.zeros((N, Cp, LX), jnp.float32).at[:, :C, FX:FX + HWp].set(xflat)

    # Validity mask over the HWo window: 1 at real HxW pixels, 0 at padding ring / lane tail.
    ii = jnp.arange(HWo)
    hh, ww = ii // Wp, ii % Wp
    mask = ((ii < HWp) & (hh >= 1) & (hh <= H) & (ww >= 1) & (ww <= W))
    mask = mask.astype(jnp.float32).reshape(1, HWo)

    def prep_w(w):
        # (C_out, C_in, 3, 3) -> (Cp, 9*Cp) with column block t = kh*3+kw holding w[:, :, kh, kw];
        # i.e. Wf[co, t*Cp + ci] = w[co, ci, kh, kw], matching the tap-stacked operand layout.
        wt = jnp.transpose(w.astype(jnp.float32), (2, 3, 0, 1)).reshape(9, C, C)   # [t, co, ci]
        wtp = jnp.zeros((9, Cp, Cp), jnp.float32).at[:, :C, :C].set(wt)
        return jnp.transpose(wtp, (1, 0, 2)).reshape(Cp, 9 * Cp)                   # [co, t*Cp+ci]

    w1m, w2m = prep_w(w1), prep_w(w2)

    kernel = _make_resblock_kernel(H, W, Cp, HWo, FX, FY, LY)

    # Explicit VMEM budget: x/out blocks double-buffered, grid-invariant mask + weights
    # (double-buffered by default; pl.Buffered(1) would halve them at large Cp), the two
    # scratches, plus headroom for compiler temporaries.
    vmem_need = 4 * (2 * Cp * LX + 2 * Cp * HWo + 2 * HWo + 2 * 2 * Cp * 9 * Cp
                     + Cp * LY + 9 * Cp * HWo)
    vmem_limit = int(min(max(2 * vmem_need + (4 << 20), 16 << 20), 64 << 20))

    out_ext = pl.pallas_call(
        kernel,
        out_shape=jax.ShapeDtypeStruct((N, Cp, HWo), jnp.float32),
        grid_spec=pltpu.PrefetchScalarGridSpec(
            num_scalar_prefetch=0,
            grid=(N,),
            in_specs=[
                pl.BlockSpec((None, Cp, LX), lambda n: (n, 0, 0)),
                pl.BlockSpec((1, HWo), lambda n: (0, 0)),
                pl.BlockSpec((Cp, 9 * Cp), lambda n: (0, 0)),
                pl.BlockSpec((Cp, 9 * Cp), lambda n: (0, 0)),
            ],
            out_specs=pl.BlockSpec((None, Cp, HWo), lambda n: (n, 0, 0)),
            scratch_shapes=[pltpu.VMEM((Cp, LY), jnp.float32),        # stage-1 activation stash
                            pltpu.VMEM((9 * Cp, HWo), jnp.float32)],  # tap-stacked conv operand
        ),
        compiler_params=pltpu.CompilerParams(
            dimension_semantics=("parallel",),
            vmem_limit_bytes=vmem_limit,
        ),
    )(xext, mask, w1m, w2m)

    # Strip channel padding and the spatial padding ring.
    out = out_ext[:, :C, :HWp].reshape(N, C, Hp, Wp)[:, :, 1:-1, 1:-1]
    return out


def resblock_reference(x, w1, b1, w2, b2):
    # Pure-JAX reference matching the PyTorch module, for correctness check.
    def conv(z, w, b):
        y = lax.conv_general_dilated(
            z, w, window_strides=(1, 1), padding=((1, 1), (1, 1)),
            dimension_numbers=("NCHW", "OIHW", "NCHW"))
        return y + b[None, :, None, None]

    def inorm(y):
        m = jnp.mean(y, axis=(2, 3), keepdims=True)
        v = jnp.mean((y - m) ** 2, axis=(2, 3), keepdims=True)
        return (y - m) / jnp.sqrt(v + EPS)

    out = jax.nn.relu(inorm(conv(x, w1, b1)))
    out = inorm(conv(out, w2, b2))
    return jax.nn.relu(out + x)


if __name__ == "__main__":
    N, C, H, W = 2, 4, 16, 16

    key = jax.random.PRNGKey(0)
    kx, kw1, kb1, kw2, kb2 = jax.random.split(key, 5)

    x = jax.random.normal(kx, (N, C, H, W), dtype=jnp.float32)
    # Conv2d weight: (C_out, C_in, 3, 3); bias: (C_out,)
    w1 = jax.random.normal(kw1, (C, C, 3, 3), dtype=jnp.float32) * 0.2
    b1 = jax.random.normal(kb1, (C,), dtype=jnp.float32) * 0.1
    w2 = jax.random.normal(kw2, (C, C, 3, 3), dtype=jnp.float32) * 0.2
    b2 = jax.random.normal(kb2, (C,), dtype=jnp.float32) * 0.1

    out = resblock_forward(x, w1, b1, w2, b2)
    out = jax.block_until_ready(out)

    ref = resblock_reference(x, w1, b1, w2, b2)
    assert out.shape == (N, C, H, W)
    assert jnp.allclose(out, ref, atol=1e-4, rtol=1e-4), (
        f"max abs err = {jnp.max(jnp.abs(out - ref))}")

    print("KERNEL_OK")
</pallas_src>

<mosaic_0001>
module attributes {stable_mosaic.version = 11 : i64} {
  func.func @kernel(%arg0: i32, %arg1: memref<1x8x512xf32, #tpu.memory_space<vmem>>, %arg2: memref<1x384xf32, #tpu.memory_space<vmem>>, %arg3: memref<8x72xf32, #tpu.memory_space<vmem>>, %arg4: memref<8x72xf32, #tpu.memory_space<vmem>>, %arg5: memref<1x8x384xf32, #tpu.memory_space<vmem>>, %arg6: memref<8x640xf32, #tpu.memory_space<vmem>>, %arg7: memref<72x384xf32, #tpu.memory_space<vmem>>) attributes {dimension_semantics = [#tpu.dimension_semantics<parallel>], iteration_bounds = array<i64: 2>, scalar_prefetch = 0 : i64, scratch_operands = 2 : i64, tpu.core_type = #tpu.core_type<tc>, window_params = [{transform_indices = @transform_0, window_bounds = array<i64: 1, 8, 512>}, {pipeline_mode = #tpu.pipeline_mode<synchronous>, transform_indices = @transform_1, window_bounds = array<i64: 1, 384>}, {pipeline_mode = #tpu.pipeline_mode<synchronous>, transform_indices = @transform_2, window_bounds = array<i64: 8, 72>}, {pipeline_mode = #tpu.pipeline_mode<synchronous>, transform_indices = @transform_3, window_bounds = array<i64: 8, 72>}, {transform_indices = @transform_4, window_bounds = array<i64: 1, 8, 384>}]} {
    %c0 = arith.constant 0 : index
    %c0_0 = arith.constant 0 : index
    %0 = vector.load %arg2[%c0, %c0_0] : memref<1x384xf32, #tpu.memory_space<vmem>>, vector<1x384xf32>
    %cst = arith.constant 0.000000e+00 : f32
    %1 = vector.broadcast %cst : f32 to vector<8x128xf32>
    %c0_1 = arith.constant 0 : index
    %c0_2 = arith.constant 0 : index
    %2 = vector.load %arg6[%c0_1, %c0_2] : memref<8x640xf32, #tpu.memory_space<vmem>>, vector<8x128xf32>
    tpu.vector_store %arg6[%c0_1, %c0_2], %1 {strides = array<i32>} : memref<8x640xf32, #tpu.memory_space<vmem>>, vector<8x128xf32>,
    %cst_3 = arith.constant 0.000000e+00 : f32
    %3 = vector.broadcast %cst_3 : f32 to vector<8x128xf32>
    %c0_4 = arith.constant 0 : index
    %c512 = arith.constant 512 : index
    %4 = vector.load %arg6[%c0_4, %c512] : memref<8x640xf32, #tpu.memory_space<vmem>>, vector<8x128xf32>
    tpu.vector_store %arg6[%c0_4, %c512], %3 {strides = array<i32>} : memref<8x640xf32, #tpu.memory_space<vmem>>, vector<8x128xf32>,
    %c0_5 = arith.constant 0 : index
    %c0_6 = arith.constant 0 : index
    %c5 = arith.constant 5 : index
    %5 = vector.load %arg1[%c0_5, %c0_6, %c5] : memref<1x8x512xf32, #tpu.memory_space<vmem>>, vector<1x8x384xf32>
    %6 = vector.shape_cast %5 : vector<1x8x384xf32> to vector<8x384xf32>
    %c0_7 = arith.constant 0 : index
    %c0_8 = arith.constant 0 : index
    %7 = vector.load %arg7[%c0_7, %c0_8] : memref<72x384xf32, #tpu.memory_space<vmem>>, vector<8x384xf32>
    tpu.vector_store %arg7[%c0_7, %c0_8], %6 {strides = array<i32>} : memref<72x384xf32, #tpu.memory_space<vmem>>, vector<8x384xf32>,
    %c0_9 = arith.constant 0 : index
    %c0_10 = arith.constant 0 : index
    %c6 = arith.constant 6 : index
    %8 = vector.load %arg1[%c0_9, %c0_10, %c6] : memref<1x8x512xf32, #tpu.memory_space<vmem>>, vector<1x8x384xf32>
    %9 = vector.shape_cast %8 : vector<1x8x384xf32> to vector<8x384xf32>
    %c8 = arith.constant 8 : index
    %c0_11 = arith.constant 0 : index
    %10 = vector.load %arg7[%c8, %c0_11] : memref<72x384xf32, #tpu.memory_space<vmem>>, vector<8x384xf32>
    tpu.vector_store %arg7[%c8, %c0_11], %9 {strides = array<i32>} : memref<72x384xf32, #tpu.memory_space<vmem>>, vector<8x384xf32>,
    %c0_12 = arith.constant 0 : index
    %c0_13 = arith.constant 0 : index
    %c7 = arith.constant 7 : index
    %11 = vector.load %arg1[%c0_12, %c0_13, %c7] : memref<1x8x512xf32, #tpu.memory_space<vmem>>, vector<1x8x384xf32>
    %12 = vector.shape_cast %11 : vector<1x8x384xf32> to vector<8x384xf32>
    %c16 = arith.constant 16 : index
    %c0_14 = arith.constant 0 : index
    %13 = vector.load %arg7[%c16, %c0_14] : memref<72x384xf32, #tpu.memory_space<vmem>>, vector<8x384xf32>
    tpu.vector_store %arg7[%c16, %c0_14], %12 {strides = array<i32>} : memref<72x384xf32, #tpu.memory_space<vmem>>, vector<8x384xf32>,
    %c0_15 = arith.constant 0 : index
    %c0_16 = arith.constant 0 : index
    %c23 = arith.constant 23 : index
    %14 = vector.load %arg1[%c0_15, %c0_16, %c23] : memref<1x8x512xf32, #tpu.memory_space<vmem>>, vector<1x8x384xf32>
    %15 = vector.shape_cast %14 : vector<1x8x384xf32> to vector<8x384xf32>
    %c24 = arith.constant 24 : index
    %c0_17 = arith.constant 0 : index
    %16 = vector.load %arg7[%c24, %c0_17] : memref<72x384xf32, #tpu.memory_space<vmem>>, vector<8x384xf32>
    tpu.vector_store %arg7[%c24, %c0_17], %15 {strides = array<i32>} : memref<72x384xf32, #tpu.memory_space<vmem>>, vector<8x384xf32>,
    %c0_18 = arith.constant 0 : index
    %c0_19 = arith.constant 0 : index
    %c24_20 = arith.constant 24 : index
    %17 = vector.load %arg1[%c0_18, %c0_19, %c24_20] : memref<1x8x512xf32, #tpu.memory_space<vmem>>, vector<1x8x384xf32>
    %18 = vector.shape_cast %17 : vector<1x8x384xf32> to vector<8x384xf32>
    %c32 = arith.constant 32 : index
    %c0_21 = arith.constant 0 : index
    %19 = vector.load %arg7[%c32, %c0_21] : memref<72x384xf32, #tpu.memory_space<vmem>>, vector<8x384xf32>
    tpu.vector_store %arg7[%c32, %c0_21], %18 {strides = array<i32>} : memref<72x384xf32, #tpu.memory_space<vmem>>, vector<8x384xf32>,
    %c0_22 = arith.constant 0 : index
    %c0_23 = arith.constant 0 : index
    %c25 = arith.constant 25 : index
    %20 = vector.load %arg1[%c0_22, %c0_23, %c25] : memref<1x8x512xf32, #tpu.memory_space<vmem>>, vector<1x8x384xf32>
    %21 = vector.shape_cast %20 : vector<1x8x384xf32> to vector<8x384xf32>
    %c40 = arith.constant 40 : index
    %c0_24 = arith.constant 0 : index
    %22 = vector.load %arg7[%c40, %c0_24] : memref<72x384xf32, #tpu.memory_space<vmem>>, vector<8x384xf32>
    tpu.vector_store %arg7[%c40, %c0_24], %21 {strides = array<i32>} : memref<72x384xf32, #tpu.memory_space<vmem>>, vector<8x384xf32>,
    %c0_25 = arith.constant 0 : index
    %c0_26 = arith.constant 0 : index
    %c41 = arith.constant 41 : index
    %23 = vector.load %arg1[%c0_25, %c0_26, %c41] : memref<1x8x512xf32, #tpu.memory_space<vmem>>, vector<1x8x384xf32>
    %24 = vector.shape_cast %23 : vector<1x8x384xf32> to vector<8x384xf32>
    %c48 = arith.constant 48 : index
    %c0_27 = arith.constant 0 : index
    %25 = vector.load %arg7[%c48, %c0_27] : memref<72x384xf32, #tpu.memory_space<vmem>>, vector<8x384xf32>
    tpu.vector_store %arg7[%c48, %c0_27], %24 {strides = array<i32>} : memref<72x384xf32, #tpu.memory_space<vmem>>, vector<8x384xf32>,
    %c0_28 = arith.constant 0 : index
    %c0_29 = arith.constant 0 : index
    %c42 = arith.constant 42 : index
    %26 = vector.load %arg1[%c0_28, %c0_29, %c42] : memref<1x8x512xf32, #tpu.memory_space<vmem>>, vector<1x8x384xf32>
    %27 = vector.shape_cast %26 : vector<1x8x384xf32> to vector<8x384xf32>
    %c56 = arith.constant 56 : index
    %c0_30 = arith.constant 0 : index
    %28 = vector.load %arg7[%c56, %c0_30] : memref<72x384xf32, #tpu.memory_space<vmem>>, vector<8x384xf32>
    tpu.vector_store %arg7[%c56, %c0_30], %27 {strides = array<i32>} : memref<72x384xf32, #tpu.memory_space<vmem>>, vector<8x384xf32>,
    %c0_31 = arith.constant 0 : index
    %c0_32 = arith.constant 0 : index
    %c43 = arith.constant 43 : index
    %29 = vector.load %arg1[%c0_31, %c0_32, %c43] : memref<1x8x512xf32, #tpu.memory_space<vmem>>, vector<1x8x384xf32>
    %30 = vector.shape_cast %29 : vector<1x8x384xf32> to vector<8x384xf32>
    %c64 = arith.constant 64 : index
    %c0_33 = arith.constant 0 : index
    %31 = vector.load %arg7[%c64, %c0_33] : memref<72x384xf32, #tpu.memory_space<vmem>>, vector<8x384xf32>
    tpu.vector_store %arg7[%c64, %c0_33], %30 {strides = array<i32>} : memref<72x384xf32, #tpu.memory_space<vmem>>, vector<8x384xf32>,
    %c0_34 = arith.constant 0 : index
    %c0_35 = arith.constant 0 : index
    %32 = vector.load %arg3[%c0_34, %c0_35] : memref<8x72xf32, #tpu.memory_space<vmem>>, vector<8x72xf32>
    %c0_36 = arith.constant 0 : index
    %c0_37 = arith.constant 0 : index
    %33 = vector.load %arg7[%c0_36, %c0_37] : memref<72x384xf32, #tpu.memory_space<vmem>>, vector<72x384xf32>
    %cst_38 = arith.constant dense<0.000000e+00> : vector<8x384xf32>
    %34 = tpu.matmul %32, %33, %cst_38 {dimension_numbers = #tpu.dot_dimension_numbers<[1], [0], [0], [1], [0, 0, 1, 1], [], []>} : vector<8x72xf32>, vector<72x384xf32>, vector<8x384xf32> -> vector<8x384xf32>
    %35 = vector.broadcast %0 : vector<1x384xf32> to vector<8x384xf32>
    %36 = arith.mulf %34, %35 : vector<8x384xf32>
    %cst_39 = arith.constant dense<0.000000e+00> : vector<8xf32>
    %37 = vector.multi_reduction <add>, %36, %cst_39 [1] : vector<8x384xf32> to vector<8xf32>
    %38 = vector.shape_cast %37 : vector<8xf32> to vector<8x1xf32>
    %39 = arith.mulf %36, %36 : vector<8x384xf32>
    %cst_40 = arith.constant dense<0.000000e+00> : vector<8xf32>
    %40 = vector.multi_reduction <add>, %39, %cst_40 [1] : vector<8x384xf32> to vector<8xf32>
    %41 = vector.shape_cast %40 : vector<8xf32> to vector<8x1xf32>
    %cst_41 = arith.constant 3.906250e-03 : f32
    %42 = vector.broadcast %cst_41 : f32 to vector<8x1xf32>
    %43 = arith.mulf %38, %42 : vector<8x1xf32>
    %cst_42 = arith.constant 3.906250e-03 : f32
    %44 = vector.broadcast %cst_42 : f32 to vector<8x1xf32>
    %45 = arith.mulf %41, %44 : vector<8x1xf32>
    %46 = arith.mulf %43, %43 : vector<8x1xf32>
    %47 = arith.subf %45, %46 : vector<8x1xf32>
    %cst_43 = arith.constant 0.000000e+00 : f32
    %48 = vector.broadcast %cst_43 : f32 to vector<8x1xf32>
    %49 = arith.maximumf %47, %48 : vector<8x1xf32>
    %50 = vector.broadcast %43 : vector<8x1xf32> to vector<8x384xf32>
    %51 = arith.subf %36, %50 : vector<8x384xf32>
    %cst_44 = arith.constant 9.99999974E-6 : f32
    %52 = vector.broadcast %cst_44 : f32 to vector<8x1xf32>
    %53 = arith.addf %49, %52 : vector<8x1xf32>
    %54 = math.rsqrt %53 : vector<8x1xf32>
    %55 = vector.broadcast %54 : vector<8x1xf32> to vector<8x384xf32>
    %56 = arith.mulf %51, %55 : vector<8x384xf32>
    %cst_45 = arith.constant 0.000000e+00 : f32
    %57 = vector.broadcast %cst_45 : f32 to vector<8x384xf32>
    %58 = arith.maximumf %56, %57 : vector<8x384xf32>
    %59 = vector.broadcast %0 : vector<1x384xf32> to vector<8x384xf32>
    %60 = arith.mulf %58, %59 : vector<8x384xf32>
    %c0_46 = arith.constant 0 : index
    %c128 = arith.constant 128 : index
    %61 = vector.load %arg6[%c0_46, %c128] : memref<8x640xf32, #tpu.memory_space<vmem>>, vector<8x384xf32>
    tpu.vector_store %arg6[%c0_46, %c128], %60 {strides = array<i32>} : memref<8x640xf32, #tpu.memory_space<vmem>>, vector<8x384xf32>,
    %c0_47 = arith.constant 0 : index
    %c109 = arith.constant 109 : index
    %62 = vector.load %arg6[%c0_47, %c109] : memref<8x640xf32, #tpu.memory_space<vmem>>, vector<8x384xf32>
    %c0_48 = arith.constant 0 : index
    %c0_49 = arith.constant 0 : index
    %63 = vector.load %arg7[%c0_48, %c0_49] : memref<72x384xf32, #tpu.memory_space<vmem>>, vector<8x384xf32>
    tpu.vector_store %arg7[%c0_48, %c0_49], %62 {strides = array<i32>} : memref<72x384xf32, #tpu.memory_space<vmem>>, vector<8x384xf32>,
    %c0_50 = arith.constant 0 : index
    %c110 = arith.constant 110 : index
    %64 = vector.load %arg6[%c0_50, %c110] : memref<8x640xf32, #tpu.memory_space<vmem>>, vector<8x384xf32>
    %c8_51 = arith.constant 8 : index
    %c0_52 = arith.constant 0 : index
    %65 = vector.load %arg7[%c8_51, %c0_52] : memref<72x384xf32, #tpu.memory_space<vmem>>, vector<8x384xf32>
    tpu.vector_store %arg7[%c8_51, %c0_52], %64 {strides = array<i32>} : memref<72x384xf32, #tpu.memory_space<vmem>>, vector<8x384xf32>,
    %c0_53 = arith.constant 0 : index
    %c111 = arith.constant 111 : index
    %66 = vector.load %arg6[%c0_53, %c111] : memref<8x640xf32, #tpu.memory_space<vmem>>, vector<8x384xf32>
    %c16_54 = arith.constant 16 : index
    %c0_55 = arith.constant 0 : index
    %67 = vector.load %arg7[%c16_54, %c0_55] : memref<72x384xf32, #tpu.memory_space<vmem>>, vector<8x384xf32>
    tpu.vector_store %arg7[%c16_54, %c0_55], %66 {strides = array<i32>} : memref<72x384xf32, #tpu.memory_space<vmem>>, vector<8x384xf32>,
    %c0_56 = arith.constant 0 : index
    %c127 = arith.constant 127 : index
    %68 = vector.load %arg6[%c0_56, %c127] : memref<8x640xf32, #tpu.memory_space<vmem>>, vector<8x384xf32>
    %c24_57 = arith.constant 24 : index
    %c0_58 = arith.constant 0 : index
    %69 = vector.load %arg7[%c24_57, %c0_58] : memref<72x384xf32, #tpu.memory_space<vmem>>, vector<8x384xf32>
    tpu.vector_store %arg7[%c24_57, %c0_58], %68 {strides = array<i32>} : memref<72x384xf32, #tpu.memory_space<vmem>>, vector<8x384xf32>,
    %c32_59 = arith.constant 32 : index
    %c0_60 = arith.constant 0 : index
    %70 = vector.load %arg7[%c32_59, %c0_60] : memref<72x384xf32, #tpu.memory_space<vmem>>, vector<8x384xf32>
    tpu.vector_store %arg7[%c32_59, %c0_60], %60 {strides = array<i32>} : memref<72x384xf32, #tpu.memory_space<vmem>>, vector<8x384xf32>,
    %c0_61 = arith.constant 0 : index
    %c129 = arith.constant 129 : index
    %71 = vector.load %arg6[%c0_61, %c129] : memref<8x640xf32, #tpu.memory_space<vmem>>, vector<8x384xf32>
    %c40_62 = arith.constant 40 : index
    %c0_63 = arith.constant 0 : index
    %72 = vector.load %arg7[%c40_62, %c0_63] : memref<72x384xf32, #tpu.memory_space<vmem>>, vector<8x384xf32>
    tpu.vector_store %arg7[%c40_62, %c0_63], %71 {strides = array<i32>} : memref<72x384xf32, #tpu.memory_space<vmem>>, vector<8x384xf32>,
    %c0_64 = arith.constant 0 : index
    %c145 = arith.constant 145 : index
    %73 = vector.load %arg6[%c0_64, %c145] : memref<8x640xf32, #tpu.memory_space<vmem>>, vector<8x384xf32>
    %c48_65 = arith.constant 48 : index
    %c0_66 = arith.constant 0 : index
    %74 = vector.load %arg7[%c48_65, %c0_66] : memref<72x384xf32, #tpu.memory_space<vmem>>, vector<8x384xf32>
    tpu.vector_store %arg7[%c48_65, %c0_66], %73 {strides = array<i32>} : memref<72x384xf32, #tpu.memory_space<vmem>>, vector<8x384xf32>,
    %c0_67 = arith.constant 0 : index
    %c146 = arith.constant 146 : index
    %75 = vector.load %arg6[%c0_67, %c146] : memref<8x640xf32, #tpu.memory_space<vmem>>, vector<8x384xf32>
    %c56_68 = arith.constant 56 : index
    %c0_69 = arith.constant 0 : index
    %76 = vector.load %arg7[%c56_68, %c0_69] : memref<72x384xf32, #tpu.memory_space<vmem>>, vector<8x384xf32>
    tpu.vector_store %arg7[%c56_68, %c0_69], %75 {strides = array<i32>} : memref<72x384xf32, #tpu.memory_space<vmem>>, vector<8x384xf32>,
    %c0_70 = arith.constant 0 : index
    %c147 = arith.constant 147 : index
    %77 = vector.load %arg6[%c0_70, %c147] : memref<8x640xf32, #tpu.memory_space<vmem>>, vector<8x384xf32>
    %c64_71 = arith.constant 64 : index
    %c0_72 = arith.constant 0 : index
    %78 = vector.load %arg7[%c64_71, %c0_72] : memref<72x384xf32, #tpu.memory_space<vmem>>, vector<8x384xf32>
    tpu.vector_store %arg7[%c64_71, %c0_72], %77 {strides = array<i32>} : memref<72x384xf32, #tpu.memory_space<vmem>>, vector<8x384xf32>,
    %c0_73 = arith.constant 0 : index
    %c0_74 = arith.constant 0 : index
    %79 = vector.load %arg4[%c0_73, %c0_74] : memref<8x72xf32, #tpu.memory_space<vmem>>, vector<8x72xf32>
    %c0_75 = arith.constant 0 : index
    %c0_76 = arith.constant 0 : index
    %80 = vector.load %arg7[%c0_75, %c0_76] : memref<72x384xf32, #tpu.memory_space<vmem>>, vector<72x384xf32>
    %cst_77 = arith.constant dense<0.000000e+00> : vector<8x384xf32>
    %81 = tpu.matmul %79, %80, %cst_77 {dimension_numbers = #tpu.dot_dimension_numbers<[1], [0], [0], [1], [0, 0, 1, 1], [], []>} : vector<8x72xf32>, vector<72x384xf32>, vector<8x384xf32> -> vector<8x384xf32>
    %82 = vector.broadcast %0 : vector<1x384xf32> to vector<8x384xf32>
    %83 = arith.mulf %81, %82 : vector<8x384xf32>
    %cst_78 = arith.constant dense<0.000000e+00> : vector<8xf32>
    %84 = vector.multi_reduction <add>, %83, %cst_78 [1] : vector<8x384xf32> to vector<8xf32>
    %85 = vector.shape_cast %84 : vector<8xf32> to vector<8x1xf32>
    %86 = arith.mulf %83, %83 : vector<8x384xf32>
    %cst_79 = arith.constant dense<0.000000e+00> : vector<8xf32>
    %87 = vector.multi_reduction <add>, %86, %cst_79 [1] : vector<8x384xf32> to vector<8xf32>
    %88 = vector.shape_cast %87 : vector<8xf32> to vector<8x1xf32>
    %cst_80 = arith.constant 3.906250e-03 : f32
    %89 = vector.broadcast %cst_80 : f32 to vector<8x1xf32>
    %90 = arith.mulf %85, %89 : vector<8x1xf32>
    %cst_81 = arith.constant 3.906250e-03 : f32
    %91 = vector.broadcast %cst_81 : f32 to vector<8x1xf32>
    %92 = arith.mulf %88, %91 : vector<8x1xf32>
    %93 = arith.mulf %90, %90 : vector<8x1xf32>
    %94 = arith.subf %92, %93 : vector<8x1xf32>
    %cst_82 = arith.constant 0.000000e+00 : f32
    %95 = vector.broadcast %cst_82 : f32 to vector<8x1xf32>
    %96 = arith.maximumf %94, %95 : vector<8x1xf32>
    %97 = vector.broadcast %90 : vector<8x1xf32> to vector<8x384xf32>
    %98 = arith.subf %83, %97 : vector<8x384xf32>
    %cst_83 = arith.constant 9.99999974E-6 : f32
    %99 = vector.broadcast %cst_83 : f32 to vector<8x1xf32>
    %100 = arith.addf %96, %99 : vector<8x1xf32>
    %101 = math.rsqrt %100 : vector<8x1xf32>
    %102 = vector.broadcast %101 : vector<8x1xf32> to vector<8x384xf32>
    %103 = arith.mulf %98, %102 : vector<8x384xf32>
    %c0_84 = arith.constant 0 : index
    %c0_85 = arith.constant 0 : index
    %c24_86 = arith.constant 24 : index
    %104 = vector.load %arg1[%c0_84, %c0_85, %c24_86] : memref<1x8x512xf32, #tpu.memory_space<vmem>>, vector<1x8x384xf32>
    %105 = vector.shape_cast %104 : vector<1x8x384xf32> to vector<8x384xf32>
    %106 = arith.addf %103, %105 : vector<8x384xf32>
    %cst_87 = arith.constant 0.000000e+00 : f32
    %107 = vector.broadcast %cst_87 : f32 to vector<8x384xf32>
    %108 = arith.maximumf %106, %107 : vector<8x384xf32>
    %c0_88 = arith.constant 0 : index
    %c0_89 = arith.constant 0 : index
    %c0_90 = arith.constant 0 : index
    %109 = vector.load %arg5[%c0_88, %c0_89, %c0_90] : memref<1x8x384xf32, #tpu.memory_space<vmem>>, vector<1x8x384xf32>
    %110 = vector.shape_cast %109 : vector<1x8x384xf32> to vector<8x384xf32>
    %111 = vector.shape_cast %108 : vector<8x384xf32> to vector<1x8x384xf32>
    tpu.vector_store %arg5[%c0_88, %c0_89, %c0_90], %111 {strides = array<i32>} : memref<1x8x384xf32, #tpu.memory_space<vmem>>, vector<1x8x384xf32>,
    return
  }
  func.func @transform_0(%arg0: i32) -> (i32, i32, i32) {
    %c0_i32 = arith.constant 0 : i32
    %c0_i32_0 = arith.constant 0 : i32
    %c0_i32_1 = arith.constant 0 : i32
    return %arg0, %c0_i32, %c0_i32_0 : i32, i32, i32
  }
  func.func @transform_1(%arg0: i32) -> (i32, i32) {
    %c0_i32 = arith.constant 0 : i32
    %c0_i32_0 = arith.constant 0 : i32
    %c0_i32_1 = arith.constant 0 : i32
    return %c0_i32, %c0_i32_0 : i32, i32
  }
  func.func @transform_2(%arg0: i32) -> (i32, i32) {
    %c0_i32 = arith.constant 0 : i32
    %c0_i32_0 = arith.constant 0 : i32
    %c0_i32_1 = arith.constant 0 : i32
    return %c0_i32, %c0_i32_0 : i32, i32
  }
  func.func @transform_3(%arg0: i32) -> (i32, i32) {
    %c0_i32 = arith.constant 0 : i32
    %c0_i32_0 = arith.constant 0 : i32
    %c0_i32_1 = arith.constant 0 : i32
    return %c0_i32, %c0_i32_0 : i32, i32
  }
  func.func @transform_4(%arg0: i32) -> (i32, i32, i32) {
    %c0_i32 = arith.constant 0 : i32
    %c0_i32_0 = arith.constant 0 : i32
    %c0_i32_1 = arith.constant 0 : i32
    return %arg0, %c0_i32, %c0_i32_0 : i32, i32, i32
  }
}

</mosaic_0001>

<llo_original>
// kernel: tpu_custom_call.1
$region0: #{tpu_custom_call.1}
  #allocation0 [shape = 'u32[]', space=smem, size = 0x4, offset = 0x4, fixed_abs, tag = 'smem constant byte address 0x4 - core index']
  #allocation1 [shape = 'u32[144,128]{1,0:T(1,128)}', space=vmem, size = 0x12000, scoped, tag = 'internal scratch']
  #allocation2 [shape = 'f32[8,640]{1,0:T(8,128)}', space=vmem, size = 0x5000, scoped, tag = 'scratch operand']
  #allocation3 [shape = 'f32[72,384]{1,0:T(8,128)}', space=vmem, size = 0x1b000, scoped, tag = 'scratch operand']
  %s0 = inlined_call_operand.hbm [shape: f32[2,8,512], index: 0, kind: input, shape index: {}]
  %s1 = inlined_call_operand.hbm [shape: f32[1,384], index: 1, kind: input, shape index: {}]
  %s2 = inlined_call_operand.hbm [shape: f32[8,72], index: 2, kind: input, shape index: {}]
  %s3 = inlined_call_operand.hbm [shape: f32[8,72], index: 3, kind: input, shape index: {}]
  %s4 = inlined_call_operand.hbm [shape: f32[2,8,384], index: 4, kind: output, shape index: {}]
  %s5 = sld [smem:[#allocation0]]
  $region65: #{tpu_custom_call.1} parent=0
    _
  %s7 = ssub.s32 1, %s5
  %s8 = scalar_select 0, %s7, %s5
  $region1: #{tpu_custom_call.1} parent=0
    #allocation4 [shape = 'u8[32768]{0}', space=vmem, size = 0x8000, scoped, tag = 'input window, operand 0']
    #allocation5 [shape = 's32[2]{0}', space=sflag, size = 0x8, scoped, tag = 'scoped memory for tpu_custom_call.1']
    #allocation6 [shape = 's32[2]{0}', space=sflag, size = 0x8, scoped, tag = 'scoped memory for tpu_custom_call.1']
    #allocation7 [shape = 'u8[1536]{0}', space=vmem, size = 0x800, scoped, tag = 'input window, operand 1, single buffered']
    #allocation8 [shape = 's32[1]{0}', space=sflag, size = 0x4, scoped, tag = 'scoped memory for tpu_custom_call.1']
    #allocation9 [shape = 'u8[4096]{0}', space=vmem, size = 0x1000, scoped, tag = 'input window, operand 2, single buffered']
    #allocation10 [shape = 'u8[4096]{0}', space=vmem, size = 0x1000, scoped, tag = 'input window, operand 3, single buffered']
    #allocation11 [shape = 's32[1]{0}', space=sflag, size = 0x4, scoped, tag = 'scoped memory for tpu_custom_call.1']
    #allocation12 [shape = 'u8[24576]{0}', space=vmem, size = 0x6000, scoped, tag = 'output window, operand 0']
    %9 = vsyncpa [#allocation5], 0
    %s10 = scalar_lea.sflag [#allocation5], 1
    %11 = vsyncpa %s10, 0
    %12 = vsyncpa [#allocation8], 0
    %13 = vsyncpa [#allocation11], 0
    %14 = vsyncpa [#allocation6], 0
    %s15 = scalar_lea.sflag [#allocation6], 1
    %16 = vsyncpa %s15, 0
    loop: start=0, step=1, limit=4
    $region2: #{tpu_custom_call.1} parent=1 // loop_pre_header
      _
    $region3: #{tpu_custom_call.1} parent=1 // loop_header
      %s18 = sphi 0, %s22
      %p19 = scmp.ge.s32.totalorder %s18, 4
      %s28 = sphi 0, %s30
      %s31 = sphi 0, %s28
      %s32 = sphi 0, %s31
      %s48 = sphi 0, %s32
      %s52 = sphi 0, %s52
      %s54 = sphi 0, %s52
      %s55 = sphi 0, %s54
      %s69 = sphi 0, %s55
      %s73 = sphi 0, %s73
      %s75 = sphi 0, %s73
      %s76 = sphi 0, %s75
      %s90 = sphi 0, %s76
      %s94 = sphi 0, %s94
      %s96 = sphi 0, %s94
      %s97 = sphi 0, %s96
      %s111 = sphi 0, %s97
      %s117 = sphi 0, %s119
      %s120 = sphi 0, %s117
      %s121 = sphi 0, %s120
      %s137 = sphi 0, %s121
    $region4: #{tpu_custom_call.1} parent=1 // loop_header_branch
      %21 = sbr.rel (%p19) target = $region8
    $region5: #{tpu_custom_call.1} parent=1 // loop_body
      %s23 = ssub.s32 %s18, 1
      %s24 = ssub.s32 %s18, 2
      %s25 = sadd.s32 %s18, 1
      %s26 = ssub.s32 %s18, %s25
      %p27 = scmp.eq.s32.totalorder %s26, 0
      %s29 = sadd.s32 %s28, 1
      %s30 = scalar_select %p27, %s28, %s29
      %p33 = pneg %p27
      %p34 = scmp.eq.s32.totalorder %s18, 1
      %p35 = por %p33, %p34
      %p36 = scmp.ne.s32.totalorder %s28, %s31
      %p37 = scmp.eq.s32.totalorder %s18, 0
      %p38 = por %p36, %p37
      %p39 = scmp.ne.s32.totalorder %s28, %s31
      %p40 = scmp.eq.s32.totalorder %s23, 1
      %p41 = por %p39, %p40
      %p42 = scmp.ne.s32.totalorder %s31, %s32
      %p43 = scmp.eq.s32.totalorder %s23, 0
      %p44 = por %p42, %p43
      %p45 = scmp.ne.s32.totalorder %s31, %s32
      %p46 = scmp.eq.s32.totalorder %s24, 1
      %p47 = por %p45, %p46
      %p49 = scmp.ne.s32.totalorder %s32, %s48
      %p50 = scmp.eq.s32.totalorder %s24, 0
      %p51 = por %p49, %p50
      %s53 = sadd.s32 %s52, 1
      %p56 = scmp.eq.s32.totalorder %s18, 1
      %p57 = scmp.ne.s32.totalorder %s52, %s54
      %p58 = scmp.eq.s32.totalorder %s18, 0
      %p59 = por %p57, %p58
      %p60 = scmp.ne.s32.totalorder %s52, %s54
      %p61 = scmp.eq.s32.totalorder %s23, 1
      %p62 = por %p60, %p61
      %p63 = scmp.ne.s32.totalorder %s54, %s55
      %p64 = scmp.eq.s32.totalorder %s23, 0
      %p65 = por %p63, %p64
      %p66 = scmp.ne.s32.totalorder %s54, %s55
      %p67 = scmp.eq.s32.totalorder %s24, 1
      %p68 = por %p66, %p67
      %p70 = scmp.ne.s32.totalorder %s55, %s69
      %p71 = scmp.eq.s32.totalorder %s24, 0
      %p72 = por %p70, %p71
      %s74 = sadd.s32 %s73, 1
      %p77 = scmp.eq.s32.totalorder %s18, 1
      %p78 = scmp.ne.s32.totalorder %s73, %s75
      %p79 = scmp.eq.s32.totalorder %s18, 0
      %p80 = por %p78, %p79
      %p81 = scmp.ne.s32.totalorder %s73, %s75
      %p82 = scmp.eq.s32.totalorder %s23, 1
      %p83 = por %p81, %p82
      %p84 = scmp.ne.s32.totalorder %s75, %s76
      %p85 = scmp.eq.s32.totalorder %s23, 0
      %p86 = por %p84, %p85
      %p87 = scmp.ne.s32.totalorder %s75, %s76
      %p88 = scmp.eq.s32.totalorder %s24, 1
      %p89 = por %p87, %p88
      %p91 = scmp.ne.s32.totalorder %s76, %s90
      %p92 = scmp.eq.s32.totalorder %s24, 0
      %p93 = por %p91, %p92
      %s95 = sadd.s32 %s94, 1
      %p98 = scmp.eq.s32.totalorder %s18, 1
      %p99 = scmp.ne.s32.totalorder %s94, %s96
      %p100 = scmp.eq.s32.totalorder %s18, 0
      %p101 = por %p99, %p100
      %p102 = scmp.ne.s32.totalorder %s94, %s96
      %p103 = scmp.eq.s32.totalorder %s23, 1
      %p104 = por %p102, %p103
      %p105 = scmp.ne.s32.totalorder %s96, %s97
      %p106 = scmp.eq.s32.totalorder %s23, 0
      %p107 = por %p105, %p106
      %p108 = scmp.ne.s32.totalorder %s96, %s97
      %p109 = scmp.eq.s32.totalorder %s24, 1
      %p110 = por %p108, %p109
      %p112 = scmp.ne.s32.totalorder %s97, %s111
      %p113 = scmp.eq.s32.totalorder %s24, 0
      %p114 = por %p112, %p113
      %s115 = ssub.s32 %s18, %s25
      %p116 = scmp.eq.s32.totalorder %s115, 0
      %s118 = sadd.s32 %s117, 1
      %s119 = scalar_select %p116, %s117, %s118
      %p122 = pneg %p116
      %p123 = scmp.eq.s32.totalorder %s18, 1
      %p124 = por %p122, %p123
      %p125 = scmp.ne.s32.totalorder %s117, %s120
      %p126 = scmp.eq.s32.totalorder %s18, 0
      %p127 = por %p125, %p126
      %p128 = scmp.ne.s32.totalorder %s117, %s120
      %p129 = scmp.eq.s32.totalorder %s23, 1
      %p130 = por %p128, %p129
      %p131 = scmp.ne.s32.totalorder %s120, %s121
      %p132 = scmp.eq.s32.totalorder %s23, 0
      %p133 = por %p131, %p132
      %p134 = scmp.ne.s32.totalorder %s120, %s121
      %p135 = scmp.eq.s32.totalorder %s24, 1
      %p136 = por %p134, %p135
      %p138 = scmp.ne.s32.totalorder %s121, %s137
      %p139 = scmp.eq.s32.totalorder %s24, 0
      %p140 = por %p138, %p139
      %p141 = scmp.le.s32.totalorder 1, %s18
      %p142 = scmp.lt.s32.totalorder %s18, 3
      %p143 = pnand %p141, %p142
      %p144 = pneg %p143
      // Predicated region
      $region9: #{tpu_custom_call.1} parent=5 // pred_check
        _
      $region10: #{tpu_custom_call.1} parent=5 // pred_check_branch
        %146 = sbr.rel (%p143) target = $region12
      $region11: #{tpu_custom_call.1} parent=5 // pred_region
        %s147 = ssub.s32 %s18, 1
        // Predicated region
        $region13: #{tpu_custom_call.1} parent=11 // pred_check
          %p148 = pneg %p65
        $region14: #{tpu_custom_call.1} parent=11 // pred_check_branch
          %150 = sbr.rel (%p148) target = $region16
        $region15: #{tpu_custom_call.1} parent=11 // pred_region
          %s152 = ssub.s32 48, 48
          %153 = vsyncadd [#allocation8], %s152
          %s155 = sshll.u32 [#allocation7], 4
          %s156 = int_to_ptr.vmem [resolvable:$true] %s155
          %158 = dma.hbm_to_vmem [thread:$0]  %s1, 48, %s156, [#allocation8]
        $region16: #{tpu_custom_call.1} parent=11 // pred_fallthru
          _
        // Predicated region
        $region17: #{tpu_custom_call.1} parent=11 // pred_check
          %p159 = pneg %p86
        $region18: #{tpu_custom_call.1} parent=11 // pred_check_branch
          %161 = sbr.rel (%p159) target = $region20
        $region19: #{tpu_custom_call.1} parent=11 // pred_region
          %s163 = ssub.s32 128, 128
          %164 = vsyncadd [#allocation8], %s163
          %s166 = sshll.u32 [#allocation9], 4
          %s167 = int_to_ptr.vmem [resolvable:$true] %s166
          %169 = dma.hbm_to_vmem [thread:$0]  %s2, 128, %s167, [#allocation8]
        $region20: #{tpu_custom_call.1} parent=11 // pred_fallthru
          _
        // Predicated region
        $region21: #{tpu_custom_call.1} parent=11 // pred_check
          %p170 = pneg %p107
        $region22: #{tpu_custom_call.1} parent=11 // pred_check_branch
          %172 = sbr.rel (%p170) target = $region24
        $region23: #{tpu_custom_call.1} parent=11 // pred_region
          %s174 = ssub.s32 128, 128
          %175 = vsyncadd [#allocation11], %s174
          %s177 = sshll.u32 [#allocation10], 4
          %s178 = int_to_ptr.vmem [resolvable:$true] %s177
          %180 = dma.hbm_to_vmem [thread:$0]  %s3, 128, %s178, [#allocation11]
        $region24: #{tpu_custom_call.1} parent=11 // pred_fallthru
          _
      $region12: #{tpu_custom_call.1} parent=5 // pred_fallthru
        _
      %p181 = scmp.lt.s32.totalorder %s18, 2
      // Predicated region
      $region25: #{tpu_custom_call.1} parent=5 // pred_check
        %p182 = pneg %p181
      $region26: #{tpu_custom_call.1} parent=5 // pred_check_branch
        %184 = sbr.rel (%p182) target = $region28
      $region27: #{tpu_custom_call.1} parent=5 // pred_region
        // Predicated region
        $region29: #{tpu_custom_call.1} parent=27 // pred_check
          %p185 = pneg %p38
        $region30: #{tpu_custom_call.1} parent=27 // pred_check_branch
          %187 = sbr.rel (%p185) target = $region32
        $region31: #{tpu_custom_call.1} parent=27 // pred_region
          %s188 = sand.u32 %s28, 1
          %s189 = scalar_lea.sflag [#allocation5], %s188
          %s190 = sand.u32 %s28, 1
          %s191 = smul.addr %s190, 32
          %s192 = scalar_lea.vmem [#allocation4], %s191
          %s194 = ssub.s32 512, 512
          %195 = vsyncadd %s189, %s194
          %s196 = smul.addr %s18, 4
          %s197 = smul.addr %s196, 128
          %s198 = scalar_lea.hbm %s0, %s197
          %s200 = sshll.u32 %s192, 4
          %s201 = int_to_ptr.vmem [resolvable:$true] %s200
          %203 = dma.hbm_to_vmem [thread:$0]  %s198, 512, %s201, %s189
        $region32: #{tpu_custom_call.1} parent=27 // pred_fallthru
          _
      $region28: #{tpu_custom_call.1} parent=5 // pred_fallthru
        _
      %p204 = scmp.le.s32.totalorder 1, %s18
      %p205 = scmp.lt.s32.totalorder %s18, 3
      %p206 = pnand %p204, %p205
      %p207 = pneg %p206
      // Predicated region
      $region33: #{tpu_custom_call.1} parent=5 // pred_check
        _
      $region34: #{tpu_custom_call.1} parent=5 // pred_check_branch
        %209 = sbr.rel (%p206) target = $region36
      $region35: #{tpu_custom_call.1} parent=5 // pred_region
        %s210 = ssub.s32 %s18, 1
        %s211 = sand.u32 %s31, 1
        %s212 = scalar_lea.sflag [#allocation5], %s211
        %s213 = sand.u32 %s31, 1
        %s214 = smul.addr %s213, 32
        %s215 = scalar_lea.vmem [#allocation4], %s214
        // Predicated region
        $region37: #{tpu_custom_call.1} parent=35 // pred_check
          %p216 = pneg %p44
        $region38: #{tpu_custom_call.1} parent=35 // pred_check_branch
          %218 = sbr.rel (%p216) target = $region40
        $region39: #{tpu_custom_call.1} parent=35 // pred_region
          %219 = dma.done %s212, 512
        $region40: #{tpu_custom_call.1} parent=35 // pred_fallthru
          _
        // Predicated region
        $region41: #{tpu_custom_call.1} parent=35 // pred_check
          %p220 = pneg %p65
        $region42: #{tpu_custom_call.1} parent=35 // pred_check_branch
          %222 = sbr.rel (%p220) target = $region44
        $region43: #{tpu_custom_call.1} parent=35 // pred_region
          %223 = dma.done [#allocation8], 48
        $region44: #{tpu_custom_call.1} parent=35 // pred_fallthru
          _
        // Predicated region
        $region45: #{tpu_custom_call.1} parent=35 // pred_check
          %p224 = pneg %p86
        $region46: #{tpu_custom_call.1} parent=35 // pred_check_branch
          %226 = sbr.rel (%p224) target = $region48
        $region47: #{tpu_custom_call.1} parent=35 // pred_region
          %227 = dma.done [#allocation8], 128
        $region48: #{tpu_custom_call.1} parent=35 // pred_fallthru
          _
        // Predicated region
        $region49: #{tpu_custom_call.1} parent=35 // pred_check
          %p228 = pneg %p107
        $region50: #{tpu_custom_call.1} parent=35 // pred_check_branch
          %230 = sbr.rel (%p228) target = $region52
        $region51: #{tpu_custom_call.1} parent=35 // pred_region
          %231 = dma.done [#allocation11], 128
        $region52: #{tpu_custom_call.1} parent=35 // pred_fallthru
          _
        %s232 = sand.u32 %s31, 1
        %s233 = scalar_lea.sflag [#allocation5], %s232
        %s234 = sand.u32 %s31, 1
        %s235 = smul.addr %s234, 32
        %s236 = scalar_lea.vmem [#allocation4], %s235
        %p237 = pneg %p44
        %p238 = pneg %p41
        %p239 = pneg %p65
        %p240 = pneg %p62
        %p241 = pneg %p86
        %p242 = pneg %p83
        %p243 = pneg %p107
        %p244 = pneg %p104
        %p245 = pneg %p133
        %p246 = pneg %p130
        %s247 = sand.u32 %s120, 1
        %s248 = scalar_lea.sflag [#allocation6], %s247
        %s249 = sand.u32 %s120, 1
        %s250 = smul.addr %s249, 24
        %s251 = scalar_lea.vmem [#allocation12], %s250
        %v252 = vld [vmem:[#allocation7] sm:$0x7]
        %253 = vst [vmem:[#allocation2] sm:$0xff] 0.0
        %254 = vst [vmem:[#allocation2 + $0x20] sm:$0xff] 0.0
        %v255 = vld [vmem:[%s215] sm:$0xff]
        %v256 = vld [vmem:[%s215 + $0x8] sm:$0xff]
        %v257 = vld [vmem:[%s215 + $0x10] sm:$0xff]
        %v258 = vld [vmem:[%s215 + $0x18] sm:$0xff]
        %263 = vrot.lane.b32.xlu0 %v255, 123
        %v264 = vpop.permute.xlu0 %263
        %265 = vrot.lane.b32.xlu0 %v256, 123
        %v266 = vpop.permute.xlu0 %265
        %267 = vrot.lane.b32.xlu0 %v257, 123
        %v268 = vpop.permute.xlu0 %267
        %269 = vrot.lane.b32.xlu0 %v258, 123
        %v270 = vpop.permute.xlu0 %269
        %vm271 = vcmask 1006592
        %v272 = vsel %vm271, %v264, %v266
        %v273 = vsel %vm271, %v266, %v268
        %v274 = vsel %vm271, %v268, %v270
        %278 = vst [vmem:[#allocation3] sm:$0xff] %v272
        %279 = vst [vmem:[#allocation3 + $0x8] sm:$0xff] %v273
        %280 = vst [vmem:[#allocation3 + $0x10] sm:$0xff] %v274
        %v281 = vld [vmem:[%s215] sm:$0xff]
        %v282 = vld [vmem:[%s215 + $0x8] sm:$0xff]
        %v283 = vld [vmem:[%s215 + $0x10] sm:$0xff]
        %v284 = vld [vmem:[%s215 + $0x18] sm:$0xff]
        %289 = vrot.lane.b32.xlu0 %v281, 122
        %v290 = vpop.permute.xlu0 %289
        %291 = vrot.lane.b32.xlu0 %v282, 122
        %v292 = vpop.permute.xlu0 %291
        %293 = vrot.lane.b32.xlu0 %v283, 122
        %v294 = vpop.permute.xlu0 %293
        %295 = vrot.lane.b32.xlu0 %v284, 122
        %v296 = vpop.permute.xlu0 %295
        %vm297 = vcmask 998400
        %v298 = vsel %vm297, %v290, %v292
        %v299 = vsel %vm297, %v292, %v294
        %v300 = vsel %vm297, %v294, %v296
        %304 = vst [vmem:[#allocation3 + $0x18] sm:$0xff] %v298
        %305 = vst [vmem:[#allocation3 + $0x20] sm:$0xff] %v299
        %306 = vst [vmem:[#allocation3 + $0x28] sm:$0xff] %v300
        %v307 = vld [vmem:[%s215] sm:$0xff]
        %v308 = vld [vmem:[%s215 + $0x8] sm:$0xff]
        %v309 = vld [vmem:[%s215 + $0x10] sm:$0xff]
        %v310 = vld [vmem:[%s215 + $0x18] sm:$0xff]
        %315 = vrot.lane.b32.xlu0 %v307, 121
        %v316 = vpop.permute.xlu0 %315
        %317 = vrot.lane.b32.xlu0 %v308, 121
        %v318 = vpop.permute.xlu0 %317
        %319 = vrot.lane.b32.xlu0 %v309, 121
        %v320 = vpop.permute.xlu0 %319
        %321 = vrot.lane.b32.xlu0 %v310, 121
        %v322 = vpop.permute.xlu0 %321
        %vm323 = vcmask 990208
        %v324 = vsel %vm323, %v316, %v318
        %v325 = vsel %vm323, %v318, %v320
        %v326 = vsel %vm323, %v320, %v322
        %330 = vst [vmem:[#allocation3 + $0x30] sm:$0xff] %v324
        %331 = vst [vmem:[#allocation3 + $0x38] sm:$0xff] %v325
        %332 = vst [vmem:[#allocation3 + $0x40] sm:$0xff] %v326
        %v333 = vld [vmem:[%s215] sm:$0xff]
        %v334 = vld [vmem:[%s215 + $0x8] sm:$0xff]
        %v335 = vld [vmem:[%s215 + $0x10] sm:$0xff]
        %v336 = vld [vmem:[%s215 + $0x18] sm:$0xff]
        %341 = vrot.lane.b32.xlu0 %v333, 105
        %v342 = vpop.permute.xlu0 %341
        %343 = vrot.lane.b32.xlu0 %v334, 105
        %v344 = vpop.permute.xlu0 %343
        %345 = vrot.lane.b32.xlu0 %v335, 105
        %v346 = vpop.permute.xlu0 %345
        %347 = vrot.lane.b32.xlu0 %v336, 105
        %v348 = vpop.permute.xlu0 %347
        %vm349 = vcmask 859136
        %v350 = vsel %vm349, %v342, %v344
        %v351 = vsel %vm349, %v344, %v346
        %v352 = vsel %vm349, %v346, %v348
        %356 = vst [vmem:[#allocation3 + $0x48] sm:$0xff] %v350
        %357 = vst [vmem:[#allocation3 + $0x50] sm:$0xff] %v351
        %358 = vst [vmem:[#allocation3 + $0x58] sm:$0xff] %v352
        %v359 = vld [vmem:[%s215] sm:$0xff]
        %v360 = vld [vmem:[%s215 + $0x8] sm:$0xff]
        %v361 = vld [vmem:[%s215 + $0x10] sm:$0xff]
        %v362 = vld [vmem:[%s215 + $0x18] sm:$0xff]
        %367 = vrot.lane.b32.xlu0 %v359, 104
        %v368 = vpop.permute.xlu0 %367
        %369 = vrot.lane.b32.xlu0 %v360, 104
        %v370 = vpop.permute.xlu0 %369
        %371 = vrot.lane.b32.xlu0 %v361, 104
        %v372 = vpop.permute.xlu0 %371
        %373 = vrot.lane.b32.xlu0 %v362, 104
        %v374 = vpop.permute.xlu0 %373
        %vm375 = vcmask 850944
        %v376 = vsel %vm375, %v368, %v370
        %v377 = vsel %vm375, %v370, %v372
        %v378 = vsel %vm375, %v372, %v374
        %382 = vst [vmem:[#allocation3 + $0x60] sm:$0xff] %v376
        %383 = vst [vmem:[#allocation3 + $0x68] sm:$0xff] %v377
        %384 = vst [vmem:[#allocation3 + $0x70] sm:$0xff] %v378
        %v385 = vld [vmem:[%s215] sm:$0xff]
        %v386 = vld [vmem:[%s215 + $0x8] sm:$0xff]
        %v387 = vld [vmem:[%s215 + $0x10] sm:$0xff]
        %v388 = vld [vmem:[%s215 + $0x18] sm:$0xff]
        %393 = vrot.lane.b32.xlu0 %v385, 103
        %v394 = vpop.permute.xlu0 %393
        %395 = vrot.lane.b32.xlu0 %v386, 103
        %v396 = vpop.permute.xlu0 %395
        %397 = vrot.lane.b32.xlu0 %v387, 103
        %v398 = vpop.permute.xlu0 %397
        %399 = vrot.lane.b32.xlu0 %v388, 103
        %v400 = vpop.permute.xlu0 %399
        %vm401 = vcmask 842752
        %v402 = vsel %vm401, %v394, %v396
        %v403 = vsel %vm401, %v396, %v398
        %v404 = vsel %vm401, %v398, %v400
        %408 = vst [vmem:[#allocation3 + $0x78] sm:$0xff] %v402
        %409 = vst [vmem:[#allocation3 + $0x80] sm:$0xff] %v403
        %410 = vst [vmem:[#allocation3 + $0x88] sm:$0xff] %v404
        %v411 = vld [vmem:[%s215] sm:$0xff]
        %v412 = vld [vmem:[%s215 + $0x8] sm:$0xff]
        %v413 = vld [vmem:[%s215 + $0x10] sm:$0xff]
        %v414 = vld [vmem:[%s215 + $0x18] sm:$0xff]
        %419 = vrot.lane.b32.xlu0 %v411, 87
        %v420 = vpop.permute.xlu0 %419
        %421 = vrot.lane.b32.xlu0 %v412, 87
        %v422 = vpop.permute.xlu0 %421
        %423 = vrot.lane.b32.xlu0 %v413, 87
        %v424 = vpop.permute.xlu0 %423
        %425 = vrot.lane.b32.xlu0 %v414, 87
        %v426 = vpop.permute.xlu0 %425
        %vm427 = vcmask 711680
        %v428 = vsel %vm427, %v420, %v422
        %v429 = vsel %vm427, %v422, %v424
        %v430 = vsel %vm427, %v424, %v426
        %434 = vst [vmem:[#allocation3 + $0x90] sm:$0xff] %v428
        %435 = vst [vmem:[#allocation3 + $0x98] sm:$0xff] %v429
        %436 = vst [vmem:[#allocation3 + $0xa0] sm:$0xff] %v430
        %v437 = vld [vmem:[%s215] sm:$0xff]
        %v438 = vld [vmem:[%s215 + $0x8] sm:$0xff]
        %v439 = vld [vmem:[%s215 + $0x10] sm:$0xff]
        %v440 = vld [vmem:[%s215 + $0x18] sm:$0xff]
        %445 = vrot.lane.b32.xlu0 %v437, 86
        %v446 = vpop.permute.xlu0 %445
        %447 = vrot.lane.b32.xlu0 %v438, 86
        %v448 = vpop.permute.xlu0 %447
        %449 = vrot.lane.b32.xlu0 %v439, 86
        %v450 = vpop.permute.xlu0 %449
        %451 = vrot.lane.b32.xlu0 %v440, 86
        %v452 = vpop.permute.xlu0 %451
        %vm453 = vcmask 703488
        %v454 = vsel %vm453, %v446, %v448
        %v455 = vsel %vm453, %v448, %v450
        %v456 = vsel %vm453, %v450, %v452
        %460 = vst [vmem:[#allocation3 + $0xa8] sm:$0xff] %v454
        %461 = vst [vmem:[#allocation3 + $0xb0] sm:$0xff] %v455
        %462 = vst [vmem:[#allocation3 + $0xb8] sm:$0xff] %v456
        %v463 = vld [vmem:[%s215] sm:$0xff]
        %v464 = vld [vmem:[%s215 + $0x8] sm:$0xff]
        %v465 = vld [vmem:[%s215 + $0x10] sm:$0xff]
        %v466 = vld [vmem:[%s215 + $0x18] sm:$0xff]
        %471 = vrot.lane.b32.xlu0 %v463, 85
        %v472 = vpop.permute.xlu0 %471
        %473 = vrot.lane.b32.xlu0 %v464, 85
        %v474 = vpop.permute.xlu0 %473
        %475 = vrot.lane.b32.xlu0 %v465, 85
        %v476 = vpop.permute.xlu0 %475
        %477 = vrot.lane.b32.xlu0 %v466, 85
        %v478 = vpop.permute.xlu0 %477
        %vm479 = vcmask 695296
        %v480 = vsel %vm479, %v472, %v474
        %v481 = vsel %vm479, %v474, %v476
        %v482 = vsel %vm479, %v476, %v478
        %486 = vst [vmem:[#allocation3 + $0xc0] sm:$0xff] %v480
        %487 = vst [vmem:[#allocation3 + $0xc8] sm:$0xff] %v481
        %488 = vst [vmem:[#allocation3 + $0xd0] sm:$0xff] %v482
        %v489 = vld [vmem:[#allocation9] sm:$0xff]
        %v490 = vld [vmem:[#allocation3] sm:$0xff]
        %v491 = vld [vmem:[#allocation3 + $0x8] sm:$0xff]
        %v492 = vld [vmem:[#allocation3 + $0x10] sm:$0xff]
        %v493 = vld [vmem:[#allocation3 + $0x18] sm:$0xff]
        %v494 = vld [vmem:[#allocation3 + $0x20] sm:$0xff]
        %v495 = vld [vmem:[#allocation3 + $0x28] sm:$0xff]
        %v496 = vld [vmem:[#allocation3 + $0x30] sm:$0xff]
        %v497 = vld [vmem:[#allocation3 + $0x38] sm:$0xff]
        %v498 = vld [vmem:[#allocation3 + $0x40] sm:$0xff]
        %v499 = vld [vmem:[#allocation3 + $0x48] sm:$0xff]
        %v500 = vld [vmem:[#allocation3 + $0x50] sm:$0xff]
        %v501 = vld [vmem:[#allocation3 + $0x58] sm:$0xff]
        %v502 = vld [vmem:[#allocation3 + $0x60] sm:$0xff]
        %v503 = vld [vmem:[#allocation3 + $0x68] sm:$0xff]
        %v504 = vld [vmem:[#allocation3 + $0x70] sm:$0xff]
        %v505 = vld [vmem:[#allocation3 + $0x78] sm:$0xff]
        %v506 = vld [vmem:[#allocation3 + $0x80] sm:$0xff]
        %v507 = vld [vmem:[#allocation3 + $0x88] sm:$0xff]
        %v508 = vld [vmem:[#allocation3 + $0x90] sm:$0xff]
        %v509 = vld [vmem:[#allocation3 + $0x98] sm:$0xff]
        %v510 = vld [vmem:[#allocation3 + $0xa0] sm:$0xff]
        %v511 = vld [vmem:[#allocation3 + $0xa8] sm:$0xff]
        %v512 = vld [vmem:[#allocation3 + $0xb0] sm:$0xff]
        %v513 = vld [vmem:[#allocation3 + $0xb8] sm:$0xff]
        %v514 = vld [vmem:[#allocation3 + $0xc0] sm:$0xff]
        %v515 = vld [vmem:[#allocation3 + $0xc8] sm:$0xff]
        %v516 = vld [vmem:[#allocation3 + $0xd0] sm:$0xff]
        %vm517 = vcmask 588800
        %v519 = vsel %vm517, %v489, 0
        %521 = vmatprep.subr.mxu0 0.0
        %522 = vmatpush1.msra.mxu0 0.0
        %523 = vmatprep.subr.mxu0 0.0
        %524 = vmatpush1.msra.mxu0 0.0
        %525 = vmatprep.subr.mxu0 0.0
        %526 = vmatpush1.msra.mxu0 0.0
        %527 = vmatprep.subr.mxu0 0.0
        %528 = vmatpush1.msra.mxu0 0.0
        %529 = vmatprep.subr.mxu0 0.0
        %530 = vmatpush1.msra.mxu0 0.0
        %531 = vmatprep.subr.mxu0 0.0
        %532 = vmatpush1.msra.mxu0 0.0
        %533 = vmatprep.subr.mxu0 0.0
        %534 = vmatpush1.msra.mxu0 0.0
        %535 = vmatprep.subr.mxu0 %v515
        %536 = vmatpush1.msra.mxu0 %v514
        %537 = vmatprep.subr.mxu0 %v512
        %538 = vmatpush1.msra.mxu0 %v511
        %539 = vmatprep.subr.mxu0 %v509
        %540 = vmatpush1.msra.mxu0 %v508
        %541 = vmatprep.subr.mxu0 %v506
        %542 = vmatpush1.msra.mxu0 %v505
        %543 = vmatprep.subr.mxu0 %v503
        %544 = vmatpush1.msra.mxu0 %v502
        %545 = vmatprep.subr.mxu0 %v500
        %546 = vmatpush1.msra.mxu0 %v499
        %547 = vmatprep.subr.mxu0 %v497
        %548 = vmatpush1.msra.mxu0 %v496
        %549 = vmatprep.subr.mxu0 %v494
        %550 = vmatpush1.msra.mxu0 %v493
        %551 = vmatprep.subr.mxu0 %v491
        %552 = vmatpush1.msra.mxu0 %v490
        %553 = vmatprep.subr.mxu0 0.0
        %554 = vmatpush2.msra.mxu0 0.0
        %555 = vmatprep.subr.mxu0 0.0
        %556 = vmatpush2.msra.mxu0 0.0
        %557 = vmatprep.subr.mxu0 0.0
        %558 = vmatpush2.msra.mxu0 0.0
        %559 = vmatprep.subr.mxu0 0.0
        %560 = vmatpush2.msra.mxu0 0.0
        %561 = vmatprep.subr.mxu0 0.0
        %562 = vmatpush2.msra.mxu0 0.0
        %563 = vmatprep.subr.mxu0 0.0
        %564 = vmatpush2.msra.mxu0 0.0
        %565 = vmatprep.subr.mxu0 0.0
        %566 = vmatpush2.msra.mxu0 0.0
        %567 = vmatprep.subr.mxu0 0.0
        %568 = vmatpush2.msra.mxu0 0.0
        %569 = vmatprep.subr.mxu0 0.0
        %570 = vmatpush2.msra.mxu0 0.0
        %571 = vmatprep.subr.mxu0 0.0
        %572 = vmatpush2.msra.mxu0 0.0
        %573 = vmatprep.subr.mxu0 0.0
        %574 = vmatpush2.msra.mxu0 0.0
        %575 = vmatprep.subr.mxu0 0.0
        %576 = vmatpush2.msra.mxu0 0.0
        %577 = vmatprep.subr.mxu0 0.0
        %578 = vmatpush2.msra.mxu0 0.0
        %579 = vmatprep.subr.mxu0 0.0
        %580 = vmatpush2.msra.mxu0 0.0
        %581 = vmatprep.subr.mxu0 0.0
        %582 = vmatpush2.msra.mxu0 0.0
        %583 = vmatprep.subr.mxu0 0.0
        %584 = vmatpush2.msra.mxu0 0.0
        %585 = vmatprep.mubr.f32.mxu0 0.0
        %586 = vmatmul.mubr.f32.gmra.mxu0 %v519
        %v587 = vpop.f32.mrf.mxu0
        %v588 = vadd.f32 0.0, %v587
        %v589 = vpop.f32.mrf.mxu0
        %v590 = vadd.f32 0.0, %v589
        %591 = vdwg.mxu0
        %592 = vmatprep.subr.mxu0 0.0
        %593 = vmatpush1.msra.mxu0 0.0
        %594 = vmatprep.subr.mxu0 0.0
        %595 = vmatpush1.msra.mxu0 0.0
        %596 = vmatprep.subr.mxu0 0.0
        %597 = vmatpush1.msra.mxu0 0.0
        %598 = vmatprep.subr.mxu0 0.0
        %599 = vmatpush1.msra.mxu0 0.0
        %600 = vmatprep.subr.mxu0 0.0
        %601 = vmatpush1.msra.mxu0 0.0
        %602 = vmatprep.subr.mxu0 0.0
        %603 = vmatpush1.msra.mxu0 0.0
        %604 = vmatprep.subr.mxu0 0.0
        %605 = vmatpush1.msra.mxu0 0.0
        %606 = vmatprep.subr.mxu0 0.0
        %607 = vmatpush1.msra.mxu0 %v516
        %608 = vmatprep.subr.mxu0 0.0
        %609 = vmatpush1.msra.mxu0 %v513
        %610 = vmatprep.subr.mxu0 0.0
        %611 = vmatpush1.msra.mxu0 %v510
        %612 = vmatprep.subr.mxu0 0.0
        %613 = vmatpush1.msra.mxu0 %v507
        %614 = vmatprep.subr.mxu0 0.0
        %615 = vmatpush1.msra.mxu0 %v504
        %616 = vmatprep.subr.mxu0 0.0
        %617 = vmatpush1.msra.mxu0 %v501
        %618 = vmatprep.subr.mxu0 0.0
        %619 = vmatpush1.msra.mxu0 %v498
        %620 = vmatprep.subr.mxu0 0.0
        %621 = vmatpush1.msra.mxu0 %v495
        %622 = vmatprep.subr.mxu0 0.0
        %623 = vmatpush1.msra.mxu0 %v492
        %624 = vmatprep.subr.mxu0 0.0
        %625 = vmatpush2.msra.mxu0 0.0
        %626 = vmatprep.subr.mxu0 0.0
        %627 = vmatpush2.msra.mxu0 0.0
        %628 = vmatprep.subr.mxu0 0.0
        %629 = vmatpush2.msra.mxu0 0.0
        %630 = vmatprep.subr.mxu0 0.0
        %631 = vmatpush2.msra.mxu0 0.0
        %632 = vmatprep.subr.mxu0 0.0
        %633 = vmatpush2.msra.mxu0 0.0
        %634 = vmatprep.subr.mxu0 0.0
        %635 = vmatpush2.msra.mxu0 0.0
        %636 = vmatprep.subr.mxu0 0.0
        %637 = vmatpush2.msra.mxu0 0.0
        %638 = vmatprep.subr.mxu0 0.0
        %639 = vmatpush2.msra.mxu0 0.0
        %640 = vmatprep.subr.mxu0 0.0
        %641 = vmatpush2.msra.mxu0 0.0
        %642 = vmatprep.subr.mxu0 0.0
        %643 = vmatpush2.msra.mxu0 0.0
        %644 = vmatprep.subr.mxu0 0.0
        %645 = vmatpush2.msra.mxu0 0.0
        %646 = vmatprep.subr.mxu0 0.0
        %647 = vmatpush2.msra.mxu0 0.0
        %648 = vmatprep.subr.mxu0 0.0
        %649 = vmatpush2.msra.mxu0 0.0
        %650 = vmatprep.subr.mxu0 0.0
        %651 = vmatpush2.msra.mxu0 0.0
        %652 = vmatprep.subr.mxu0 0.0
        %653 = vmatpush2.msra.mxu0 0.0
        %654 = vmatprep.subr.mxu0 0.0
        %655 = vmatpush2.msra.mxu0 0.0
        %656 = vmatprep.mubr.f32.mxu0 0.0
        %657 = vmatmul.mubr.f32.gmra.mxu0 %v519
        %v658 = vpop.f32.mrf.mxu0
        %v659 = vadd.f32 0.0, %v658
        %v660 = vpop.f32.mrf.mxu0
        %661 = vdwg.mxu0
        %v663 = vlaneseq
        %v664 = vshrl.u32 %v663, 7
        %v665 = vsub.s32 0, %v664
        %v666 = vrot.slane %v252, %v665
        %v667 = vlaneseq
        %v668 = vshrl.u32 %v667, 7
        %v669 = vsub.s32 1, %v668
        %v670 = vrot.slane %v252, %v669
        %v671 = vlaneseq
        %v672 = vshrl.u32 %v671, 7
        %v673 = vsub.s32 2, %v672
        %v674 = vrot.slane %v252, %v673
        %v678 = vmul.f32 %v588, %v666
        %v679 = vmul.f32 %v590, %v670
        %v680 = vmul.f32 %v659, %v674
        %v681 = vadd.f32 %v678, %v679
        %v682 = vadd.f32 %v681, %v680
        %683 = vadd.xlane.f32.xlu0 %v682
        %v684 = vpop.xlane.xlu0 %683
        %v685 = vmul.f32 %v678, %v678
        %v686 = vmul.f32 %v679, %v679
        %v687 = vmul.f32 %v680, %v680
        %v688 = vadd.f32 %v685, %v686
        %v689 = vadd.f32 %v688, %v687
        %690 = vadd.xlane.f32.xlu0 %v689
        %v691 = vpop.xlane.xlu0 %690
        %v692 = vmul.f32 %v684, 0.00390625
        %v693 = vmul.f32 %v691, 0.00390625
        %v694 = vmul.f32 %v692, %v692
        %v695 = vsub.f32 %v693, %v694
        %v696 = vmax.f32 %v695, 0.0
        %v697 = vsub.f32 %v678, %v692
        %v698 = vsub.f32 %v679, %v692
        %v699 = vsub.f32 %v680, %v692
        %v700 = vadd.f32 %v696, 1e-05
        %v701 = vrsqrt.pop %v700
        %v702 = vmul.f32 %v697, %v701
        %v703 = vmul.f32 %v698, %v701
        %v704 = vmul.f32 %v699, %v701
        %v705 = vmax.f32 %v702, 0.0
        %v706 = vmax.f32 %v703, 0.0
        %v707 = vmax.f32 %v704, 0.0
        %v708 = vmul.f32 %v705, %v666
        %v709 = vmul.f32 %v706, %v670
        %v710 = vmul.f32 %v707, %v674
        %711 = vst [vmem:[#allocation2 + $0x8] sm:$0xff] %v708
        %712 = vst [vmem:[#allocation2 + $0x10] sm:$0xff] %v709
        %713 = vst [vmem:[#allocation2 + $0x18] sm:$0xff] %v710
        %v714 = vld [vmem:[#allocation2] sm:$0xff]
        %v715 = vld [vmem:[#allocation2 + $0x8] sm:$0xff]
        %v716 = vld [vmem:[#allocation2 + $0x10] sm:$0xff]
        %v717 = vld [vmem:[#allocation2 + $0x18] sm:$0xff]
        %722 = vrot.lane.b32.xlu0 %v714, 19
        %v723 = vpop.permute.xlu0 %722
        %724 = vrot.lane.b32.xlu0 %v715, 19
        %v725 = vpop.permute.xlu0 %724
        %726 = vrot.lane.b32.xlu0 %v716, 19
        %v727 = vpop.permute.xlu0 %726
        %728 = vrot.lane.b32.xlu0 %v717, 19
        %v729 = vpop.permute.xlu0 %728
        %vm730 = vcmask 154624
        %v731 = vsel %vm730, %v723, %v725
        %v732 = vsel %vm730, %v725, %v727
        %v733 = vsel %vm730, %v727, %v729
        %737 = vst [vmem:[#allocation3] sm:$0xff] %v731
        %738 = vst [vmem:[#allocation3 + $0x8] sm:$0xff] %v732
        %739 = vst [vmem:[#allocation3 + $0x10] sm:$0xff] %v733
        %v740 = vld [vmem:[#allocation2] sm:$0xff]
        %v741 = vld [vmem:[#allocation2 + $0x8] sm:$0xff]
        %v742 = vld [vmem:[#allocation2 + $0x10] sm:$0xff]
        %v743 = vld [vmem:[#allocation2 + $0x18] sm:$0xff]
        %748 = vrot.lane.b32.xlu0 %v740, 18
        %v749 = vpop.permute.xlu0 %748
        %750 = vrot.lane.b32.xlu0 %v741, 18
        %v751 = vpop.permute.xlu0 %750
        %752 = vrot.lane.b32.xlu0 %v742, 18
        %v753 = vpop.permute.xlu0 %752
        %754 = vrot.lane.b32.xlu0 %v743, 18
        %v755 = vpop.permute.xlu0 %754
        %vm756 = vcmask 146432
        %v757 = vsel %vm756, %v749, %v751
        %v758 = vsel %vm756, %v751, %v753
        %v759 = vsel %vm756, %v753, %v755
        %763 = vst [vmem:[#allocation3 + $0x18] sm:$0xff] %v757
        %764 = vst [vmem:[#allocation3 + $0x20] sm:$0xff] %v758
        %765 = vst [vmem:[#allocation3 + $0x28] sm:$0xff] %v759
        %v766 = vld [vmem:[#allocation2] sm:$0xff]
        %v767 = vld [vmem:[#allocation2 + $0x8] sm:$0xff]
        %v768 = vld [vmem:[#allocation2 + $0x10] sm:$0xff]
        %v769 = vld [vmem:[#allocation2 + $0x18] sm:$0xff]
        %774 = vrot.lane.b32.xlu0 %v766, 17
        %v775 = vpop.permute.xlu0 %774
        %776 = vrot.lane.b32.xlu0 %v767, 17
        %v777 = vpop.permute.xlu0 %776
        %778 = vrot.lane.b32.xlu0 %v768, 17
        %v779 = vpop.permute.xlu0 %778
        %780 = vrot.lane.b32.xlu0 %v769, 17
        %v781 = vpop.permute.xlu0 %780
        %vm782 = vcmask 138240
        %v783 = vsel %vm782, %v775, %v777
        %v784 = vsel %vm782, %v777, %v779
        %v785 = vsel %vm782, %v779, %v781
        %789 = vst [vmem:[#allocation3 + $0x30] sm:$0xff] %v783
        %790 = vst [vmem:[#allocation3 + $0x38] sm:$0xff] %v784
        %791 = vst [vmem:[#allocation3 + $0x40] sm:$0xff] %v785
        %v792 = vld [vmem:[#allocation2] sm:$0xff]
        %v793 = vld [vmem:[#allocation2 + $0x8] sm:$0xff]
        %v794 = vld [vmem:[#allocation2 + $0x10] sm:$0xff]
        %v795 = vld [vmem:[#allocation2 + $0x18] sm:$0xff]
        %800 = vrot.lane.b32.xlu0 %v792, 1
        %v801 = vpop.permute.xlu0 %800
        %802 = vrot.lane.b32.xlu0 %v793, 1
        %v803 = vpop.permute.xlu0 %802
        %804 = vrot.lane.b32.xlu0 %v794, 1
        %v805 = vpop.permute.xlu0 %804
        %806 = vrot.lane.b32.xlu0 %v795, 1
        %v807 = vpop.permute.xlu0 %806
        %vm808 = vcmask 7168
        %v809 = vsel %vm808, %v801, %v803
        %v810 = vsel %vm808, %v803, %v805
        %v811 = vsel %vm808, %v805, %v807
        %815 = vst [vmem:[#allocation3 + $0x48] sm:$0xff] %v809
        %816 = vst [vmem:[#allocation3 + $0x50] sm:$0xff] %v810
        %817 = vst [vmem:[#allocation3 + $0x58] sm:$0xff] %v811
        %818 = vst [vmem:[#allocation3 + $0x60] sm:$0xff] %v708
        %819 = vst [vmem:[#allocation3 + $0x68] sm:$0xff] %v709
        %820 = vst [vmem:[#allocation3 + $0x70] sm:$0xff] %v710
        %v821 = vld [vmem:[#allocation2 + $0x8] sm:$0xff]
        %v822 = vld [vmem:[#allocation2 + $0x10] sm:$0xff]
        %v823 = vld [vmem:[#allocation2 + $0x18] sm:$0xff]
        %v824 = vld [vmem:[#allocation2 + $0x20] sm:$0xff]
        %829 = vrot.lane.b32.xlu0 %v821, 127
        %v830 = vpop.permute.xlu0 %829
        %831 = vrot.lane.b32.xlu0 %v822, 127
        %v832 = vpop.permute.xlu0 %831
        %833 = vrot.lane.b32.xlu0 %v823, 127
        %v834 = vpop.permute.xlu0 %833
        %835 = vrot.lane.b32.xlu0 %v824, 127
        %v836 = vpop.permute.xlu0 %835
        %vm837 = vcmask 1039360
        %v838 = vsel %vm837, %v830, %v832
        %v839 = vsel %vm837, %v832, %v834
        %v840 = vsel %vm837, %v834, %v836
        %844 = vst [vmem:[#allocation3 + $0x78] sm:$0xff] %v838
        %845 = vst [vmem:[#allocation3 + $0x80] sm:$0xff] %v839
        %846 = vst [vmem:[#allocation3 + $0x88] sm:$0xff] %v840
        %v847 = vld [vmem:[#allocation2 + $0x8] sm:$0xff]
        %v848 = vld [vmem:[#allocation2 + $0x10] sm:$0xff]
        %v849 = vld [vmem:[#allocation2 + $0x18] sm:$0xff]
        %v850 = vld [vmem:[#allocation2 + $0x20] sm:$0xff]
        %855 = vrot.lane.b32.xlu0 %v847, 111
        %v856 = vpop.permute.xlu0 %855
        %857 = vrot.lane.b32.xlu0 %v848, 111
        %v858 = vpop.permute.xlu0 %857
        %859 = vrot.lane.b32.xlu0 %v849, 111
        %v860 = vpop.permute.xlu0 %859
        %861 = vrot.lane.b32.xlu0 %v850, 111
        %v862 = vpop.permute.xlu0 %861
        %vm863 = vcmask 908288
        %v864 = vsel %vm863, %v856, %v858
        %v865 = vsel %vm863, %v858, %v860
        %v866 = vsel %vm863, %v860, %v862
        %870 = vst [vmem:[#allocation3 + $0x90] sm:$0xff] %v864
        %871 = vst [vmem:[#allocation3 + $0x98] sm:$0xff] %v865
        %872 = vst [vmem:[#allocation3 + $0xa0] sm:$0xff] %v866
        %v873 = vld [vmem:[#allocation2 + $0x8] sm:$0xff]
        %v874 = vld [vmem:[#allocation2 + $0x10] sm:$0xff]
        %v875 = vld [vmem:[#allocation2 + $0x18] sm:$0xff]
        %v876 = vld [vmem:[#allocation2 + $0x20] sm:$0xff]
        %881 = vrot.lane.b32.xlu0 %v873, 110
        %v882 = vpop.permute.xlu0 %881
        %883 = vrot.lane.b32.xlu0 %v874, 110
        %v884 = vpop.permute.xlu0 %883
        %885 = vrot.lane.b32.xlu0 %v875, 110
        %v886 = vpop.permute.xlu0 %885
        %887 = vrot.lane.b32.xlu0 %v876, 110
        %v888 = vpop.permute.xlu0 %887
        %vm889 = vcmask 900096
        %v890 = vsel %vm889, %v882, %v884
        %v891 = vsel %vm889, %v884, %v886
        %v892 = vsel %vm889, %v886, %v888
        %896 = vst [vmem:[#allocation3 + $0xa8] sm:$0xff] %v890
        %897 = vst [vmem:[#allocation3 + $0xb0] sm:$0xff] %v891
        %898 = vst [vmem:[#allocation3 + $0xb8] sm:$0xff] %v892
        %v899 = vld [vmem:[#allocation2 + $0x8] sm:$0xff]
        %v900 = vld [vmem:[#allocation2 + $0x10] sm:$0xff]
        %v901 = vld [vmem:[#allocation2 + $0x18] sm:$0xff]
        %v902 = vld [vmem:[#allocation2 + $0x20] sm:$0xff]
        %907 = vrot.lane.b32.xlu0 %v899, 109
        %v908 = vpop.permute.xlu0 %907
        %909 = vrot.lane.b32.xlu0 %v900, 109
        %v910 = vpop.permute.xlu0 %909
        %911 = vrot.lane.b32.xlu0 %v901, 109
        %v912 = vpop.permute.xlu0 %911
        %913 = vrot.lane.b32.xlu0 %v902, 109
        %v914 = vpop.permute.xlu0 %913
        %vm915 = vcmask 891904
        %v916 = vsel %vm915, %v908, %v910
        %v917 = vsel %vm915, %v910, %v912
        %v918 = vsel %vm915, %v912, %v914
        %922 = vst [vmem:[#allocation3 + $0xc0] sm:$0xff] %v916
        %923 = vst [vmem:[#allocation3 + $0xc8] sm:$0xff] %v917
        %924 = vst [vmem:[#allocation3 + $0xd0] sm:$0xff] %v918
        %v925 = vld [vmem:[#allocation10] sm:$0xff]
        %v926 = vld [vmem:[#allocation3] sm:$0xff]
        %v927 = vld [vmem:[#allocation3 + $0x8] sm:$0xff]
        %v928 = vld [vmem:[#allocation3 + $0x10] sm:$0xff]
        %v929 = vld [vmem:[#allocation3 + $0x18] sm:$0xff]
        %v930 = vld [vmem:[#allocation3 + $0x20] sm:$0xff]
        %v931 = vld [vmem:[#allocation3 + $0x28] sm:$0xff]
        %v932 = vld [vmem:[#allocation3 + $0x30] sm:$0xff]
        %v933 = vld [vmem:[#allocation3 + $0x38] sm:$0xff]
        %v934 = vld [vmem:[#allocation3 + $0x40] sm:$0xff]
        %v935 = vld [vmem:[#allocation3 + $0x48] sm:$0xff]
        %v936 = vld [vmem:[#allocation3 + $0x50] sm:$0xff]
        %v937 = vld [vmem:[#allocation3 + $0x58] sm:$0xff]
        %v938 = vld [vmem:[#allocation3 + $0x60] sm:$0xff]
        %v939 = vld [vmem:[#allocation3 + $0x68] sm:$0xff]
        %v940 = vld [vmem:[#allocation3 + $0x70] sm:$0xff]
        %v941 = vld [vmem:[#allocation3 + $0x78] sm:$0xff]
        %v942 = vld [vmem:[#allocation3 + $0x80] sm:$0xff]
        %v943 = vld [vmem:[#allocation3 + $0x88] sm:$0xff]
        %v944 = vld [vmem:[#allocation3 + $0x90] sm:$0xff]
        %v945 = vld [vmem:[#allocation3 + $0x98] sm:$0xff]
        %v946 = vld [vmem:[#allocation3 + $0xa0] sm:$0xff]
        %v947 = vld [vmem:[#allocation3 + $0xa8] sm:$0xff]
        %v948 = vld [vmem:[#allocation3 + $0xb0] sm:$0xff]
        %v949 = vld [vmem:[#allocation3 + $0xb8] sm:$0xff]
        %v950 = vld [vmem:[#allocation3 + $0xc0] sm:$0xff]
        %v951 = vld [vmem:[#allocation3 + $0xc8] sm:$0xff]
        %v952 = vld [vmem:[#allocation3 + $0xd0] sm:$0xff]
        %v954 = vsel %vm517, %v925, 0
        %956 = vmatprep.subr.mxu0 0.0
        %957 = vmatpush1.msra.mxu0 0.0
        %958 = vmatprep.subr.mxu0 0.0
        %959 = vmatpush1.msra.mxu0 0.0
        %960 = vmatprep.subr.mxu0 0.0
        %961 = vmatpush1.msra.mxu0 0.0
        %962 = vmatprep.subr.mxu0 0.0
        %963 = vmatpush1.msra.mxu0 0.0
        %964 = vmatprep.subr.mxu0 0.0
        %965 = vmatpush1.msra.mxu0 0.0
        %966 = vmatprep.subr.mxu0 0.0
        %967 = vmatpush1.msra.mxu0 0.0
        %968 = vmatprep.subr.mxu0 0.0
        %969 = vmatpush1.msra.mxu0 0.0
        %970 = vmatprep.subr.mxu0 %v951
        %971 = vmatpush1.msra.mxu0 %v950
        %972 = vmatprep.subr.mxu0 %v948
        %973 = vmatpush1.msra.mxu0 %v947
        %974 = vmatprep.subr.mxu0 %v945
        %975 = vmatpush1.msra.mxu0 %v944
        %976 = vmatprep.subr.mxu0 %v942
        %977 = vmatpush1.msra.mxu0 %v941
        %978 = vmatprep.subr.mxu0 %v939
        %979 = vmatpush1.msra.mxu0 %v938
        %980 = vmatprep.subr.mxu0 %v936
        %981 = vmatpush1.msra.mxu0 %v935
        %982 = vmatprep.subr.mxu0 %v933
        %983 = vmatpush1.msra.mxu0 %v932
        %984 = vmatprep.subr.mxu0 %v930
        %985 = vmatpush1.msra.mxu0 %v929
        %986 = vmatprep.subr.mxu0 %v927
        %987 = vmatpush1.msra.mxu0 %v926
        %988 = vmatprep.subr.mxu0 0.0
        %989 = vmatpush2.msra.mxu0 0.0
        %990 = vmatprep.subr.mxu0 0.0
        %991 = vmatpush2.msra.mxu0 0.0
        %992 = vmatprep.subr.mxu0 0.0
        %993 = vmatpush2.msra.mxu0 0.0
        %994 = vmatprep.subr.mxu0 0.0
        %995 = vmatpush2.msra.mxu0 0.0
        %996 = vmatprep.subr.mxu0 0.0
        %997 = vmatpush2.msra.mxu0 0.0
        %998 = vmatprep.subr.mxu0 0.0
        %999 = vmatpush2.msra.mxu0 0.0
        %1000 = vmatprep.subr.mxu0 0.0
        %1001 = vmatpush2.msra.mxu0 0.0
        %1002 = vmatprep.subr.mxu0 0.0
        %1003 = vmatpush2.msra.mxu0 0.0
        %1004 = vmatprep.subr.mxu0 0.0
        %1005 = vmatpush2.msra.mxu0 0.0
        %1006 = vmatprep.subr.mxu0 0.0
        %1007 = vmatpush2.msra.mxu0 0.0
        %1008 = vmatprep.subr.mxu0 0.0
        %1009 = vmatpush2.msra.mxu0 0.0
        %1010 = vmatprep.subr.mxu0 0.0
        %1011 = vmatpush2.msra.mxu0 0.0
        %1012 = vmatprep.subr.mxu0 0.0
        %1013 = vmatpush2.msra.mxu0 0.0
        %1014 = vmatprep.subr.mxu0 0.0
        %1015 = vmatpush2.msra.mxu0 0.0
        %1016 = vmatprep.subr.mxu0 0.0
        %1017 = vmatpush2.msra.mxu0 0.0
        %1018 = vmatprep.subr.mxu0 0.0
        %1019 = vmatpush2.msra.mxu0 0.0
        %1020 = vmatprep.mubr.f32.mxu0 0.0
        %1021 = vmatmul.mubr.f32.gmra.mxu0 %v954
        %v1022 = vpop.f32.mrf.mxu0
        %v1023 = vadd.f32 0.0, %v1022
        %v1024 = vpop.f32.mrf.mxu0
        %v1025 = vadd.f32 0.0, %v1024
        %1026 = vdwg.mxu0
        %1027 = vmatprep.subr.mxu0 0.0
        %1028 = vmatpush1.msra.mxu0 0.0
        %1029 = vmatprep.subr.mxu0 0.0
        %1030 = vmatpush1.msra.mxu0 0.0
        %1031 = vmatprep.subr.mxu0 0.0
        %1032 = vmatpush1.msra.mxu0 0.0
        %1033 = vmatprep.subr.mxu0 0.0
        %1034 = vmatpush1.msra.mxu0 0.0
        %1035 = vmatprep.subr.mxu0 0.0
        %1036 = vmatpush1.msra.mxu0 0.0
        %1037 = vmatprep.subr.mxu0 0.0
        %1038 = vmatpush1.msra.mxu0 0.0
        %1039 = vmatprep.subr.mxu0 0.0
        %1040 = vmatpush1.msra.mxu0 0.0
        %1041 = vmatprep.subr.mxu0 0.0
        %1042 = vmatpush1.msra.mxu0 %v952
        %1043 = vmatprep.subr.mxu0 0.0
        %1044 = vmatpush1.msra.mxu0 %v949
        %1045 = vmatprep.subr.mxu0 0.0
        %1046 = vmatpush1.msra.mxu0 %v946
        %1047 = vmatprep.subr.mxu0 0.0
        %1048 = vmatpush1.msra.mxu0 %v943
        %1049 = vmatprep.subr.mxu0 0.0
        %1050 = vmatpush1.msra.mxu0 %v940
        %1051 = vmatprep.subr.mxu0 0.0
        %1052 = vmatpush1.msra.mxu0 %v937
        %1053 = vmatprep.subr.mxu0 0.0
        %1054 = vmatpush1.msra.mxu0 %v934
        %1055 = vmatprep.subr.mxu0 0.0
        %1056 = vmatpush1.msra.mxu0 %v931
        %1057 = vmatprep.subr.mxu0 0.0
        %1058 = vmatpush1.msra.mxu0 %v928
        %1059 = vmatprep.subr.mxu0 0.0
        %1060 = vmatpush2.msra.mxu0 0.0
        %1061 = vmatprep.subr.mxu0 0.0
        %1062 = vmatpush2.msra.mxu0 0.0
        %1063 = vmatprep.subr.mxu0 0.0
        %1064 = vmatpush2.msra.mxu0 0.0
        %1065 = vmatprep.subr.mxu0 0.0
        %1066 = vmatpush2.msra.mxu0 0.0
        %1067 = vmatprep.subr.mxu0 0.0
        %1068 = vmatpush2.msra.mxu0 0.0
        %1069 = vmatprep.subr.mxu0 0.0
        %1070 = vmatpush2.msra.mxu0 0.0
        %1071 = vmatprep.subr.mxu0 0.0
        %1072 = vmatpush2.msra.mxu0 0.0
        %1073 = vmatprep.subr.mxu0 0.0
        %1074 = vmatpush2.msra.mxu0 0.0
        %1075 = vmatprep.subr.mxu0 0.0
        %1076 = vmatpush2.msra.mxu0 0.0
        %1077 = vmatprep.subr.mxu0 0.0
        %1078 = vmatpush2.msra.mxu0 0.0
        %1079 = vmatprep.subr.mxu0 0.0
        %1080 = vmatpush2.msra.mxu0 0.0
        %1081 = vmatprep.subr.mxu0 0.0
        %1082 = vmatpush2.msra.mxu0 0.0
        %1083 = vmatprep.subr.mxu0 0.0
        %1084 = vmatpush2.msra.mxu0 0.0
        %1085 = vmatprep.subr.mxu0 0.0
        %1086 = vmatpush2.msra.mxu0 0.0
        %1087 = vmatprep.subr.mxu0 0.0
        %1088 = vmatpush2.msra.mxu0 0.0
        %1089 = vmatprep.subr.mxu0 0.0
        %1090 = vmatpush2.msra.mxu0 0.0
        %1091 = vmatprep.mubr.f32.mxu0 0.0
        %1092 = vmatmul.mubr.f32.gmra.mxu0 %v954
        %v1093 = vpop.f32.mrf.mxu0
        %v1094 = vadd.f32 0.0, %v1093
        %v1095 = vpop.f32.mrf.mxu0
        %1096 = vdwg.mxu0
        %v1097 = vmul.f32 %v1023, %v666
        %v1098 = vmul.f32 %v1025, %v670
        %v1099 = vmul.f32 %v1094, %v674
        %v1100 = vadd.f32 %v1097, %v1098
        %v1101 = vadd.f32 %v1100, %v1099
        %1102 = vadd.xlane.f32.xlu0 %v1101
        %v1103 = vpop.xlane.xlu0 %1102
        %v1104 = vmul.f32 %v1097, %v1097
        %v1105 = vmul.f32 %v1098, %v1098
        %v1106 = vmul.f32 %v1099, %v1099
        %v1107 = vadd.f32 %v1104, %v1105
        %v1108 = vadd.f32 %v1107, %v1106
        %1109 = vadd.xlane.f32.xlu0 %v1108
        %v1110 = vpop.xlane.xlu0 %1109
        %v1111 = vmul.f32 %v1103, 0.00390625
        %v1112 = vmul.f32 %v1110, 0.00390625
        %v1113 = vmul.f32 %v1111, %v1111
        %v1114 = vsub.f32 %v1112, %v1113
        %v1115 = vmax.f32 %v1114, 0.0
        %v1116 = vsub.f32 %v1097, %v1111
        %v1117 = vsub.f32 %v1098, %v1111
        %v1118 = vsub.f32 %v1099, %v1111
        %v1119 = vadd.f32 %v1115, 1e-05
        %v1120 = vrsqrt.pop %v1119
        %v1121 = vmul.f32 %v1116, %v1120
        %v1122 = vmul.f32 %v1117, %v1120
        %v1123 = vmul.f32 %v1118, %v1120
        %v1124 = vld [vmem:[%s215] sm:$0xff]
        %v1125 = vld [vmem:[%s215 + $0x8] sm:$0xff]
        %v1126 = vld [vmem:[%s215 + $0x10] sm:$0xff]
        %v1127 = vld [vmem:[%s215 + $0x18] sm:$0xff]
        %1132 = vrot.lane.b32.xlu0 %v1124, 104
        %v1133 = vpop.permute.xlu0 %1132
        %1134 = vrot.lane.b32.xlu0 %v1125, 104
        %v1135 = vpop.permute.xlu0 %1134
        %1136 = vrot.lane.b32.xlu0 %v1126, 104
        %v1137 = vpop.permute.xlu0 %1136
        %1138 = vrot.lane.b32.xlu0 %v1127, 104
        %v1139 = vpop.permute.xlu0 %1138
        %v1140 = vsel %vm375, %v1133, %v1135
        %v1141 = vsel %vm375, %v1135, %v1137
        %v1142 = vsel %vm375, %v1137, %v1139
        %v1146 = vadd.f32 %v1121, %v1140
        %v1147 = vadd.f32 %v1122, %v1141
        %v1148 = vadd.f32 %v1123, %v1142
        %v1149 = vmax.f32 %v1146, 0.0
        %v1150 = vmax.f32 %v1147, 0.0
        %v1151 = vmax.f32 %v1148, 0.0
        %1152 = vst [vmem:[%s251] sm:$0xff] %v1149
        %1153 = vst [vmem:[%s251 + $0x8] sm:$0xff] %v1150
        %1154 = vst [vmem:[%s251 + $0x10] sm:$0xff] %v1151
        %s1155 = sand.u32 %s120, 1
        %s1156 = scalar_lea.sflag [#allocation6], %s1155
        %s1157 = sand.u32 %s120, 1
        %s1158 = smul.addr %s1157, 24
        %s1159 = scalar_lea.vmem [#allocation12], %s1158
        // Predicated region
        $region53: #{tpu_custom_call.1} parent=35 // pred_check
          %p1160 = pneg %p130
        $region54: #{tpu_custom_call.1} parent=35 // pred_check_branch
          %1162 = sbr.rel (%p1160) target = $region56
        $region55: #{tpu_custom_call.1} parent=35 // pred_region
          %s1164 = ssub.s32 384, 384
          %1165 = vsyncadd %s1156, %s1164
          %s1166 = smul.addr %s23, 3
          %s1167 = smul.addr %s1166, 128
          %s1168 = scalar_lea.hbm %s4, %s1167
          %s1170 = sshll.u32 %s1159, 4
          %s1171 = int_to_ptr.vmem [resolvable:$true] %s1170
          %1173 = dma.vmem_to_hbm [thread:$0]  %s1171, 384, %s1168, %s1156
        $region56: #{tpu_custom_call.1} parent=35 // pred_fallthru
          _
      $region36: #{tpu_custom_call.1} parent=5 // pred_fallthru
        _
      %p1174 = scmp.le.s32.totalorder 2, %s18
      // Predicated region
      $region57: #{tpu_custom_call.1} parent=5 // pred_check
        %p1175 = pneg %p1174
      $region58: #{tpu_custom_call.1} parent=5 // pred_check_branch
        %1177 = sbr.rel (%p1175) target = $region60
      $region59: #{tpu_custom_call.1} parent=5 // pred_region
        %s1178 = ssub.s32 %s18, 2
        // Predicated region
        $region61: #{tpu_custom_call.1} parent=59 // pred_check
          %p1179 = pneg %p136
        $region62: #{tpu_custom_call.1} parent=59 // pred_check_branch
          %1181 = sbr.rel (%p1179) target = $region64
        $region63: #{tpu_custom_call.1} parent=59 // pred_region
          %s1182 = sand.u32 %s121, 1
          %s1183 = scalar_lea.sflag [#allocation6], %s1182
          %s1184 = sand.u32 %s121, 1
          %s1185 = smul.addr %s1184, 24
          %s1186 = scalar_lea.vmem [#allocation12], %s1185
          %1187 = dma.done %s1183, 384
        $region64: #{tpu_custom_call.1} parent=59 // pred_fallthru
          _
      $region60: #{tpu_custom_call.1} parent=5 // pred_fallthru
        _
    $region6: #{tpu_custom_call.1} parent=1 // loop_footer
      %s22 = sadd.s32 1, %s18
    $region7: #{tpu_custom_call.1} parent=1 // loop_footer_branch
      %17 = sbr.rel target = $region3
    $region8: #{tpu_custom_call.1} parent=1 // loop_exit
      _
    %1188 = vsyncpa [#allocation5], 1
    %s1189 = scalar_lea.sflag [#allocation5], 1
    %1190 = vsyncpa %s1189, 1
    %1191 = vsyncpa [#allocation8], 1
    %1192 = vsyncpa [#allocation11], 1
    %1193 = vsyncpa [#allocation6], 1
    %s1194 = scalar_lea.sflag [#allocation6], 1
    %1195 = vsyncpa %s1194, 1

</llo_original>
